<compile_context>
chip_gen: v6e
topology: v6e:2x2x1
jax: 0.10.0
libtpu: 0.0.40
codegen_flags: <defaults>
</compile_context>

<pallas_src>
import jax
import jax.numpy as jnp
from jax.experimental import pallas as pl
from jax.experimental.pallas import tpu as pltpu

BN_EPS = 1e-5
LANE = 128


def _round_up(x, m):
    return (x + m - 1) // m * m


def _mlp_kernel(x_ref,
                w1, b1, w2, b2, w3, b3, w4, b4, w5, b5, w6, b6,
                o_ref):
    """Whole-MLP fused kernel: 6 MXU matmuls + f32 bias/ReLU epilogues."""

    def layer(h, w_r, b_r, relu=True):
        # bf16 x bf16 -> f32 accumulation on the MXU; epilogue in f32 on the VPU.
        y = jnp.dot(h, w_r[...], preferred_element_type=jnp.float32) + b_r[...]
        if relu:
            y = jnp.maximum(y, 0.0)
        return y

    # In-kernel cast of the raw f32 input tile (no wrapper-side pad/cast pass).
    h = x_ref[...].astype(jnp.bfloat16)               # (bm, d_in) bf16
    h = layer(h, w1, b1).astype(jnp.bfloat16)         # fc1 + bn1 + relu
    h = layer(h, w2, b2).astype(jnp.bfloat16)         # fc2 + bn2 + relu
    h = layer(h, w3, b3).astype(jnp.bfloat16)         # fc3 + bn3 + relu
    h = layer(h, w4, b4).astype(jnp.bfloat16)         # fc4 + bn4 + dropout(id) + relu
    h = layer(h, w5, b5).astype(jnp.bfloat16)         # fc5 + dropout(id) + relu
    h = layer(h, w6, b6, relu=False)                  # fc6 logits, (bm, 128) f32
    # Only the first out_dim lanes are real -> narrow store keeps HBM writeback
    # at 8 B/row instead of 512 B/row.
    o_ref[...] = h[:, :o_ref.shape[-1]].astype(o_ref.dtype)


def prepare_params(params, *, compute_dtype=jnp.bfloat16):
    """Fold eval-mode BN into each Linear (in f32), pad hidden feature dims to
    128-lane multiples (layer-1 K stays at the real input_dim), and cast the
    matmul operands to `compute_dtype` (biases stay f32 for the f32 epilogue)."""
    prep = {"in_dim": params["w1"].shape[0], "out_dim": params["w6"].shape[1]}
    for l in range(1, 7):
        w = params[f"w{l}"]                       # (in, out) — already transposed
        b = params[f"b{l}"]                       # (1, out)
        if f"s{l}" in params:                     # BN folded as column scale/shift
            s, t = params[f"s{l}"], params[f"t{l}"]
            w = w * s
            b = b * s + t
        din, dout = w.shape
        din_p = din if l == 1 else _round_up(din, LANE)   # keep layer-1 K unpadded
        dout_p = _round_up(dout, LANE)
        w = jnp.pad(w, ((0, din_p - din), (0, dout_p - dout)))
        b = jnp.pad(b, ((0, 0), (0, dout_p - dout)))
        prep[f"w{l}"] = w.astype(compute_dtype)
        prep[f"b{l}"] = b.astype(jnp.float32)
    return prep


def _pick_bm(B, bm_hint):
    """Choose the batch tile: >=16 rows (bf16 native sublane pack for the
    intermediates), 256-aligned when large (full-height MXU passes), and capped
    near B/2 so the parallel grid axis has >=2 steps for v7x's two cores."""
    if B <= 16:
        return 16
    bm = min(bm_hint, _round_up((B + 1) // 2, 16))
    if bm >= 256:
        bm = (bm // 256) * 256
    else:
        bm = _round_up(bm, 16)
    return bm


def feedforward_nn_forward(x, prep, *, bm=512):
    """x: (B, input_dim) f32. prep: output of prepare_params(). Returns (B, out_dim) f32."""
    B, d_in = x.shape
    assert d_in == prep["in_dim"]
    d_out = prep["out_dim"]

    bm = _pick_bm(B, bm)
    B_pad = _round_up(B, bm)
    if B_pad != B:
        # Rare ragged-batch case only; the common path passes x through untouched.
        x = jnp.pad(x, ((0, B_pad - B), (0, 0)))

    flat_args = []
    for l in range(1, 7):
        flat_args += [prep[f"w{l}"], prep[f"b{l}"]]

    def full_spec(a):
        # Constant block index -> DMA'd once, stays resident in VMEM for all steps.
        return pl.BlockSpec(a.shape, lambda i: (0, 0))

    in_specs = [pl.BlockSpec((bm, d_in), lambda i: (i, 0))]   # raw f32 rows, full K
    in_specs += [full_spec(a) for a in flat_args]
    out_spec = pl.BlockSpec((bm, d_out), lambda i: (i, 0))    # narrow logit writeback

    flops = 2 * B_pad * sum(int(prep[f"w{l}"].shape[0]) * int(prep[f"w{l}"].shape[1])
                            for l in range(1, 7))
    bytes_accessed = (int(x.size) * x.dtype.itemsize
                      + sum(int(a.size) * a.dtype.itemsize for a in flat_args)
                      + B_pad * d_out * 4)

    out = pl.pallas_call(
        _mlp_kernel,
        out_shape=jax.ShapeDtypeStruct((B_pad, d_out), jnp.float32),
        grid_spec=pltpu.PrefetchScalarGridSpec(
            num_scalar_prefetch=0,
            grid=(B_pad // bm,),
            in_specs=in_specs,
            out_specs=out_spec,
        ),
        compiler_params=pltpu.CompilerParams(
            dimension_semantics=("parallel",)),
        cost_estimate=pl.CostEstimate(
            flops=flops, transcendentals=0, bytes_accessed=bytes_accessed),
    )(x, *flat_args)

    return out[:B]


def init_params(key, input_dim, hidden_dim=256, output_dim=2):
    """Deterministic synthetic parameters matching the PyTorch module shapes."""
    dims = [input_dim, hidden_dim, 128, 64, 32, 8, output_dim]
    has_bn = [True, True, True, True, False, False]   # bn1..bn4 used in forward()
    params = {}
    for li in range(6):
        fan_in, fan_out = dims[li], dims[li + 1]
        key, kw, kb, kg, kbe, km, kv = jax.random.split(key, 7)
        bound = 1.0 / jnp.sqrt(fan_in)
        # PyTorch stores (out, in); we store the transpose (in, out).
        params[f"w{li+1}"] = jax.random.uniform(
            kw, (fan_in, fan_out), jnp.float32, -bound, bound)
        params[f"b{li+1}"] = jax.random.uniform(
            kb, (1, fan_out), jnp.float32, -bound, bound)
        if has_bn[li]:
            gamma = 1.0 + 0.1 * jax.random.normal(kg, (1, fan_out), jnp.float32)
            beta = 0.1 * jax.random.normal(kbe, (1, fan_out), jnp.float32)
            rmean = 0.1 * jax.random.normal(km, (1, fan_out), jnp.float32)
            rvar = 0.5 + jax.random.uniform(kv, (1, fan_out), jnp.float32)
            scale = gamma * jax.lax.rsqrt(rvar + BN_EPS)
            shift = beta - rmean * scale
            params[f"s{li+1}"] = scale
            params[f"t{li+1}"] = shift
    return params


def reference_forward(x, params):
    """Pure-JAX f32 reference of the eval-mode forward (unfolded, unpadded)."""
    h = x
    for li in range(1, 7):
        h = h @ params[f"w{li}"] + params[f"b{li}"]
        if f"s{li}" in params:
            h = h * params[f"s{li}"] + params[f"t{li}"]
        if li != 6:
            h = jnp.maximum(h, 0.0)
    return h


def reference_forward_bf16(x, prep):
    """Pure-JAX reference using the same folded/padded bf16 operands as the kernel."""
    h = x.astype(jnp.bfloat16)
    for l in range(1, 7):
        y = jnp.dot(h, prep[f"w{l}"], preferred_element_type=jnp.float32) + prep[f"b{l}"]
        if l != 6:
            h = jnp.maximum(y, 0.0).astype(jnp.bfloat16)
        else:
            h = y
    return h[:, :prep["out_dim"]]


if __name__ == "__main__":
    key = jax.random.PRNGKey(0)
    k_param, k_x = jax.random.split(key)

    input_dim = 64
    batch = 256
    params = init_params(k_param, input_dim)
    x = jax.random.normal(k_x, (batch, input_dim), jnp.float32)

    prep = prepare_params(params)

    # bm picker caps the tile at B/2 -> 2 grid steps here (exercises the pipeline
    # and lets the parallel axis shard across both v7x TensorCores).
    out = feedforward_nn_forward(x, prep)
    out = jax.block_until_ready(out)
    assert out.shape == (batch, 2)

    # Tight check vs a reference with identical bf16 operands / f32 accumulation.
    ref_q = reference_forward_bf16(x, prep)
    assert jnp.allclose(out, ref_q, atol=2e-3, rtol=2e-3), "mismatch vs bf16 reference"

    # Loose sanity check vs the original f32 (unfolded) module semantics.
    ref_f32 = reference_forward(x, params)
    assert jnp.allclose(out, ref_f32, atol=1e-1, rtol=1e-1), "mismatch vs f32 reference"

    # Ragged batch exercises the (rare) row-pad path and the small-tile clamp.
    x2 = x[:100]
    out2 = jax.block_until_ready(feedforward_nn_forward(x2, prep))
    assert out2.shape == (100, 2)
    assert jnp.allclose(out2, ref_q[:100], atol=2e-3, rtol=2e-3), "ragged-batch mismatch"

    print("KERNEL_OK")
</pallas_src>

<mosaic_0001>
module attributes {stable_mosaic.version = 11 : i64} {
  func.func @_mlp_kernel(%arg0: i32, %arg1: memref<128x64xf32, #tpu.memory_space<vmem>>, %arg2: memref<64x256xbf16, #tpu.memory_space<vmem>>, %arg3: memref<1x256xf32, #tpu.memory_space<vmem>>, %arg4: memref<256x128xbf16, #tpu.memory_space<vmem>>, %arg5: memref<1x128xf32, #tpu.memory_space<vmem>>, %arg6: memref<128x128xbf16, #tpu.memory_space<vmem>>, %arg7: memref<1x128xf32, #tpu.memory_space<vmem>>, %arg8: memref<128x128xbf16, #tpu.memory_space<vmem>>, %arg9: memref<1x128xf32, #tpu.memory_space<vmem>>, %arg10: memref<128x128xbf16, #tpu.memory_space<vmem>>, %arg11: memref<1x128xf32, #tpu.memory_space<vmem>>, %arg12: memref<128x128xbf16, #tpu.memory_space<vmem>>, %arg13: memref<1x128xf32, #tpu.memory_space<vmem>>, %arg14: memref<128x2xf32, #tpu.memory_space<vmem>>) attributes {dimension_semantics = [#tpu.dimension_semantics<parallel>], iteration_bounds = array<i64: 2>, scalar_prefetch = 0 : i64, scratch_operands = 0 : i64, tpu.core_type = #tpu.core_type<tc>, window_params = [{transform_indices = @transform_0, window_bounds = array<i64: 128, 64>}, {pipeline_mode = #tpu.pipeline_mode<synchronous>, transform_indices = @transform_1, window_bounds = array<i64: 64, 256>}, {pipeline_mode = #tpu.pipeline_mode<synchronous>, transform_indices = @transform_2, window_bounds = array<i64: 1, 256>}, {pipeline_mode = #tpu.pipeline_mode<synchronous>, transform_indices = @transform_3, window_bounds = array<i64: 256, 128>}, {pipeline_mode = #tpu.pipeline_mode<synchronous>, transform_indices = @transform_4, window_bounds = array<i64: 1, 128>}, {pipeline_mode = #tpu.pipeline_mode<synchronous>, transform_indices = @transform_5, window_bounds = array<i64: 128, 128>}, {pipeline_mode = #tpu.pipeline_mode<synchronous>, transform_indices = @transform_6, window_bounds = array<i64: 1, 128>}, {pipeline_mode = #tpu.pipeline_mode<synchronous>, transform_indices = @transform_7, window_bounds = array<i64: 128, 128>}, {pipeline_mode = #tpu.pipeline_mode<synchronous>, transform_indices = @transform_8, window_bounds = array<i64: 1, 128>}, {pipeline_mode = #tpu.pipeline_mode<synchronous>, transform_indices = @transform_9, window_bounds = array<i64: 128, 128>}, {pipeline_mode = #tpu.pipeline_mode<synchronous>, transform_indices = @transform_10, window_bounds = array<i64: 1, 128>}, {pipeline_mode = #tpu.pipeline_mode<synchronous>, transform_indices = @transform_11, window_bounds = array<i64: 128, 128>}, {pipeline_mode = #tpu.pipeline_mode<synchronous>, transform_indices = @transform_12, window_bounds = array<i64: 1, 128>}, {transform_indices = @transform_13, window_bounds = array<i64: 128, 2>}]} {
    %c0 = arith.constant 0 : index
    %c0_0 = arith.constant 0 : index
    %0 = vector.load %arg1[%c0, %c0_0] : memref<128x64xf32, #tpu.memory_space<vmem>>, vector<128x64xf32>
    %1 = arith.truncf %0 : vector<128x64xf32> to vector<128x64xbf16>
    %c0_1 = arith.constant 0 : index
    %c0_2 = arith.constant 0 : index
    %2 = vector.load %arg2[%c0_1, %c0_2] : memref<64x256xbf16, #tpu.memory_space<vmem>>, vector<64x256xbf16>
    %cst = arith.constant dense<0.000000e+00> : vector<128x256xf32>
    %3 = tpu.matmul %1, %2, %cst {dimension_numbers = #tpu.dot_dimension_numbers<[1], [0], [0], [1], [0, 0, 1, 1], [], []>} : vector<128x64xbf16>, vector<64x256xbf16>, vector<128x256xf32> -> vector<128x256xf32>
    %c0_3 = arith.constant 0 : index
    %c0_4 = arith.constant 0 : index
    %4 = vector.load %arg3[%c0_3, %c0_4] : memref<1x256xf32, #tpu.memory_space<vmem>>, vector<1x256xf32>
    %5 = vector.broadcast %4 : vector<1x256xf32> to vector<128x256xf32>
    %6 = arith.addf %3, %5 : vector<128x256xf32>
    %cst_5 = arith.constant 0.000000e+00 : f32
    %7 = vector.broadcast %cst_5 : f32 to vector<128x256xf32>
    %8 = arith.maximumf %6, %7 : vector<128x256xf32>
    %9 = arith.truncf %8 : vector<128x256xf32> to vector<128x256xbf16>
    %c0_6 = arith.constant 0 : index
    %c0_7 = arith.constant 0 : index
    %10 = vector.load %arg4[%c0_6, %c0_7] : memref<256x128xbf16, #tpu.memory_space<vmem>>, vector<256x128xbf16>
    %cst_8 = arith.constant dense<0.000000e+00> : vector<128x128xf32>
    %11 = tpu.matmul %9, %10, %cst_8 {dimension_numbers = #tpu.dot_dimension_numbers<[1], [0], [0], [1], [0, 0, 1, 1], [], []>} : vector<128x256xbf16>, vector<256x128xbf16>, vector<128x128xf32> -> vector<128x128xf32>
    %c0_9 = arith.constant 0 : index
    %c0_10 = arith.constant 0 : index
    %12 = vector.load %arg5[%c0_9, %c0_10] : memref<1x128xf32, #tpu.memory_space<vmem>>, vector<1x128xf32>
    %13 = vector.broadcast %12 : vector<1x128xf32> to vector<128x128xf32>
    %14 = arith.addf %11, %13 : vector<128x128xf32>
    %cst_11 = arith.constant 0.000000e+00 : f32
    %15 = vector.broadcast %cst_11 : f32 to vector<128x128xf32>
    %16 = arith.maximumf %14, %15 : vector<128x128xf32>
    %17 = arith.truncf %16 : vector<128x128xf32> to vector<128x128xbf16>
    %c0_12 = arith.constant 0 : index
    %c0_13 = arith.constant 0 : index
    %18 = vector.load %arg6[%c0_12, %c0_13] : memref<128x128xbf16, #tpu.memory_space<vmem>>, vector<128x128xbf16>
    %cst_14 = arith.constant dense<0.000000e+00> : vector<128x128xf32>
    %19 = tpu.matmul %17, %18, %cst_14 {dimension_numbers = #tpu.dot_dimension_numbers<[1], [0], [0], [1], [0, 0, 1, 1], [], []>} : vector<128x128xbf16>, vector<128x128xbf16>, vector<128x128xf32> -> vector<128x128xf32>
    %c0_15 = arith.constant 0 : index
    %c0_16 = arith.constant 0 : index
    %20 = vector.load %arg7[%c0_15, %c0_16] : memref<1x128xf32, #tpu.memory_space<vmem>>, vector<1x128xf32>
    %21 = vector.broadcast %20 : vector<1x128xf32> to vector<128x128xf32>
    %22 = arith.addf %19, %21 : vector<128x128xf32>
    %cst_17 = arith.constant 0.000000e+00 : f32
    %23 = vector.broadcast %cst_17 : f32 to vector<128x128xf32>
    %24 = arith.maximumf %22, %23 : vector<128x128xf32>
    %25 = arith.truncf %24 : vector<128x128xf32> to vector<128x128xbf16>
    %c0_18 = arith.constant 0 : index
    %c0_19 = arith.constant 0 : index
    %26 = vector.load %arg8[%c0_18, %c0_19] : memref<128x128xbf16, #tpu.memory_space<vmem>>, vector<128x128xbf16>
    %cst_20 = arith.constant dense<0.000000e+00> : vector<128x128xf32>
    %27 = tpu.matmul %25, %26, %cst_20 {dimension_numbers = #tpu.dot_dimension_numbers<[1], [0], [0], [1], [0, 0, 1, 1], [], []>} : vector<128x128xbf16>, vector<128x128xbf16>, vector<128x128xf32> -> vector<128x128xf32>
    %c0_21 = arith.constant 0 : index
    %c0_22 = arith.constant 0 : index
    %28 = vector.load %arg9[%c0_21, %c0_22] : memref<1x128xf32, #tpu.memory_space<vmem>>, vector<1x128xf32>
    %29 = vector.broadcast %28 : vector<1x128xf32> to vector<128x128xf32>
    %30 = arith.addf %27, %29 : vector<128x128xf32>
    %cst_23 = arith.constant 0.000000e+00 : f32
    %31 = vector.broadcast %cst_23 : f32 to vector<128x128xf32>
    %32 = arith.maximumf %30, %31 : vector<128x128xf32>
    %33 = arith.truncf %32 : vector<128x128xf32> to vector<128x128xbf16>
    %c0_24 = arith.constant 0 : index
    %c0_25 = arith.constant 0 : index
    %34 = vector.load %arg10[%c0_24, %c0_25] : memref<128x128xbf16, #tpu.memory_space<vmem>>, vector<128x128xbf16>
    %cst_26 = arith.constant dense<0.000000e+00> : vector<128x128xf32>
    %35 = tpu.matmul %33, %34, %cst_26 {dimension_numbers = #tpu.dot_dimension_numbers<[1], [0], [0], [1], [0, 0, 1, 1], [], []>} : vector<128x128xbf16>, vector<128x128xbf16>, vector<128x128xf32> -> vector<128x128xf32>
    %c0_27 = arith.constant 0 : index
    %c0_28 = arith.constant 0 : index
    %36 = vector.load %arg11[%c0_27, %c0_28] : memref<1x128xf32, #tpu.memory_space<vmem>>, vector<1x128xf32>
    %37 = vector.broadcast %36 : vector<1x128xf32> to vector<128x128xf32>
    %38 = arith.addf %35, %37 : vector<128x128xf32>
    %cst_29 = arith.constant 0.000000e+00 : f32
    %39 = vector.broadcast %cst_29 : f32 to vector<128x128xf32>
    %40 = arith.maximumf %38, %39 : vector<128x128xf32>
    %41 = arith.truncf %40 : vector<128x128xf32> to vector<128x128xbf16>
    %c0_30 = arith.constant 0 : index
    %c0_31 = arith.constant 0 : index
    %42 = vector.load %arg12[%c0_30, %c0_31] : memref<128x128xbf16, #tpu.memory_space<vmem>>, vector<128x128xbf16>
    %cst_32 = arith.constant dense<0.000000e+00> : vector<128x128xf32>
    %43 = tpu.matmul %41, %42, %cst_32 {dimension_numbers = #tpu.dot_dimension_numbers<[1], [0], [0], [1], [0, 0, 1, 1], [], []>} : vector<128x128xbf16>, vector<128x128xbf16>, vector<128x128xf32> -> vector<128x128xf32>
    %c0_33 = arith.constant 0 : index
    %c0_34 = arith.constant 0 : index
    %44 = vector.load %arg13[%c0_33, %c0_34] : memref<1x128xf32, #tpu.memory_space<vmem>>, vector<1x128xf32>
    %45 = vector.broadcast %44 : vector<1x128xf32> to vector<128x128xf32>
    %46 = arith.addf %43, %45 : vector<128x128xf32>
    %47 = vector.extract_strided_slice %46 {offsets = [0, 0], sizes = [128, 2], strides = [1, 1]} : vector<128x128xf32> to vector<128x2xf32>
    %c0_35 = arith.constant 0 : index
    %c0_36 = arith.constant 0 : index
    %48 = vector.load %arg14[%c0_35, %c0_36] : memref<128x2xf32, #tpu.memory_space<vmem>>, vector<128x2xf32>
    tpu.vector_store %arg14[%c0_35, %c0_36], %47 {strides = array<i32>} : memref<128x2xf32, #tpu.memory_space<vmem>>, vector<128x2xf32>,
    return
  }
  func.func @transform_0(%arg0: i32) -> (i32, i32) {
    %c0_i32 = arith.constant 0 : i32
    %c0_i32_0 = arith.constant 0 : i32
    return %arg0, %c0_i32 : i32, i32
  }
  func.func @transform_1(%arg0: i32) -> (i32, i32) {
    %c0_i32 = arith.constant 0 : i32
    %c0_i32_0 = arith.constant 0 : i32
    %c0_i32_1 = arith.constant 0 : i32
    return %c0_i32, %c0_i32_0 : i32, i32
  }
  func.func @transform_2(%arg0: i32) -> (i32, i32) {
    %c0_i32 = arith.constant 0 : i32
    %c0_i32_0 = arith.constant 0 : i32
    %c0_i32_1 = arith.constant 0 : i32
    return %c0_i32, %c0_i32_0 : i32, i32
  }
  func.func @transform_3(%arg0: i32) -> (i32, i32) {
    %c0_i32 = arith.constant 0 : i32
    %c0_i32_0 = arith.constant 0 : i32
    %c0_i32_1 = arith.constant 0 : i32
    return %c0_i32, %c0_i32_0 : i32, i32
  }
  func.func @transform_4(%arg0: i32) -> (i32, i32) {
    %c0_i32 = arith.constant 0 : i32
    %c0_i32_0 = arith.constant 0 : i32
    %c0_i32_1 = arith.constant 0 : i32
    return %c0_i32, %c0_i32_0 : i32, i32
  }
  func.func @transform_5(%arg0: i32) -> (i32, i32) {
    %c0_i32 = arith.constant 0 : i32
    %c0_i32_0 = arith.constant 0 : i32
    %c0_i32_1 = arith.constant 0 : i32
    return %c0_i32, %c0_i32_0 : i32, i32
  }
  func.func @transform_6(%arg0: i32) -> (i32, i32) {
    %c0_i32 = arith.constant 0 : i32
    %c0_i32_0 = arith.constant 0 : i32
    %c0_i32_1 = arith.constant 0 : i32
    return %c0_i32, %c0_i32_0 : i32, i32
  }
  func.func @transform_7(%arg0: i32) -> (i32, i32) {
    %c0_i32 = arith.constant 0 : i32
    %c0_i32_0 = arith.constant 0 : i32
    %c0_i32_1 = arith.constant 0 : i32
    return %c0_i32, %c0_i32_0 : i32, i32
  }
  func.func @transform_8(%arg0: i32) -> (i32, i32) {
    %c0_i32 = arith.constant 0 : i32
    %c0_i32_0 = arith.constant 0 : i32
    %c0_i32_1 = arith.constant 0 : i32
    return %c0_i32, %c0_i32_0 : i32, i32
  }
  func.func @transform_9(%arg0: i32) -> (i32, i32) {
    %c0_i32 = arith.constant 0 : i32
    %c0_i32_0 = arith.constant 0 : i32
    %c0_i32_1 = arith.constant 0 : i32
    return %c0_i32, %c0_i32_0 : i32, i32
  }
  func.func @transform_10(%arg0: i32) -> (i32, i32) {
    %c0_i32 = arith.constant 0 : i32
    %c0_i32_0 = arith.constant 0 : i32
    %c0_i32_1 = arith.constant 0 : i32
    return %c0_i32, %c0_i32_0 : i32, i32
  }
  func.func @transform_11(%arg0: i32) -> (i32, i32) {
    %c0_i32 = arith.constant 0 : i32
    %c0_i32_0 = arith.constant 0 : i32
    %c0_i32_1 = arith.constant 0 : i32
    return %c0_i32, %c0_i32_0 : i32, i32
  }
  func.func @transform_12(%arg0: i32) -> (i32, i32) {
    %c0_i32 = arith.constant 0 : i32
    %c0_i32_0 = arith.constant 0 : i32
    %c0_i32_1 = arith.constant 0 : i32
    return %c0_i32, %c0_i32_0 : i32, i32
  }
  func.func @transform_13(%arg0: i32) -> (i32, i32) {
    %c0_i32 = arith.constant 0 : i32
    %c0_i32_0 = arith.constant 0 : i32
    return %arg0, %c0_i32 : i32, i32
  }
}

</mosaic_0001>

<llo_original>
// kernel: tpu_custom_call.1
$region0: #{tpu_custom_call.1}
  #allocation0 [shape = 'u32[]', space=smem, size = 0x4, offset = 0x4, fixed_abs, tag = 'smem constant byte address 0x4 - core index']
  #allocation1 [shape = 'u32[144,128]{1,0:T(1,128)}', space=vmem, size = 0x12000, scoped, tag = 'internal scratch']
  %s0 = inlined_call_operand.vmem [shape: f32[256,64], index: 0, kind: input, shape index: {}]
  %s1 = inlined_call_operand.vmem [shape: bf16[64,256], index: 1, kind: input, shape index: {}]
  %s2 = inlined_call_operand.hbm [shape: f32[1,256], index: 2, kind: input, shape index: {}]
  %s3 = inlined_call_operand.vmem [shape: bf16[256,128], index: 3, kind: input, shape index: {}]
  %s4 = inlined_call_operand.vmem [shape: f32[1,128], index: 4, kind: input, shape index: {}]
  %s5 = inlined_call_operand.vmem [shape: bf16[128,128], index: 5, kind: input, shape index: {}]
  %s6 = inlined_call_operand.vmem [shape: f32[1,128], index: 6, kind: input, shape index: {}]
  %s7 = inlined_call_operand.vmem [shape: bf16[128,128], index: 7, kind: input, shape index: {}]
  %s8 = inlined_call_operand.vmem [shape: f32[1,128], index: 8, kind: input, shape index: {}]
  %s9 = inlined_call_operand.vmem [shape: bf16[128,128], index: 9, kind: input, shape index: {}]
  %s10 = inlined_call_operand.vmem [shape: f32[1,128], index: 10, kind: input, shape index: {}]
  %s11 = inlined_call_operand.hbm [shape: bf16[128,128], index: 11, kind: input, shape index: {}]
  %s12 = inlined_call_operand.vmem [shape: f32[1,128], index: 12, kind: input, shape index: {}]
  %s13 = inlined_call_operand.vmem [shape: f32[256,2], index: 13, kind: output, shape index: {}]
  %s14 = sld [smem:[#allocation0]]
  $region93: #{tpu_custom_call.1} parent=0
    _
  %s16 = ssub.s32 1, %s14
  %s17 = scalar_select 0, %s16, %s14
  $region1: #{tpu_custom_call.1} parent=0
    #allocation2 [shape = 'u8[1024]{0}', space=vmem, size = 0x400, scoped, tag = 'input window, operand 2, single buffered']
    #allocation3 [shape = 's32[2]{0}', space=sflag, size = 0x8, scoped, tag = 'scoped memory for tpu_custom_call.1']
    #allocation4 [shape = 'u8[32768]{0}', space=vmem, size = 0x8000, scoped, tag = 'input window, operand 11, single buffered']
    #allocation5 [shape = 's32[1]{0}', space=sflag, size = 0x4, scoped, tag = 'scoped memory for tpu_custom_call.1']
    %18 = vsyncpa [#allocation3], 0
    %19 = vsyncpa [#allocation5], 0
    loop: start=0, step=1, limit=4
    $region2: #{tpu_custom_call.1} parent=1 // loop_pre_header
      _
    $region3: #{tpu_custom_call.1} parent=1 // loop_header
      %s21 = sphi 0, %s25
      %p22 = scmp.ge.s32.totalorder %s21, 4
      %s31 = sphi 0, %s33
      %s34 = sphi 0, %s31
      %s35 = sphi 0, %s34
      %s51 = sphi 0, %s35
      %s55 = sphi 0, %s55
      %s57 = sphi 0, %s55
      %s58 = sphi 0, %s57
      %s72 = sphi 0, %s58
      %s76 = sphi 0, %s76
      %s78 = sphi 0, %s76
      %s79 = sphi 0, %s78
      %s93 = sphi 0, %s79
      %s97 = sphi 0, %s97
      %s99 = sphi 0, %s97
      %s100 = sphi 0, %s99
      %s114 = sphi 0, %s100
      %s118 = sphi 0, %s118
      %s120 = sphi 0, %s118
      %s121 = sphi 0, %s120
      %s135 = sphi 0, %s121
      %s139 = sphi 0, %s139
      %s141 = sphi 0, %s139
      %s142 = sphi 0, %s141
      %s156 = sphi 0, %s142
      %s160 = sphi 0, %s160
      %s162 = sphi 0, %s160
      %s163 = sphi 0, %s162
      %s177 = sphi 0, %s163
      %s181 = sphi 0, %s181
      %s183 = sphi 0, %s181
      %s184 = sphi 0, %s183
      %s198 = sphi 0, %s184
      %s202 = sphi 0, %s202
      %s204 = sphi 0, %s202
      %s205 = sphi 0, %s204
      %s219 = sphi 0, %s205
      %s223 = sphi 0, %s223
      %s225 = sphi 0, %s223
      %s226 = sphi 0, %s225
      %s240 = sphi 0, %s226
      %s244 = sphi 0, %s244
      %s246 = sphi 0, %s244
      %s247 = sphi 0, %s246
      %s261 = sphi 0, %s247
      %s265 = sphi 0, %s265
      %s267 = sphi 0, %s265
      %s268 = sphi 0, %s267
      %s282 = sphi 0, %s268
      %s286 = sphi 0, %s286
      %s288 = sphi 0, %s286
      %s289 = sphi 0, %s288
      %s303 = sphi 0, %s289
      %s309 = sphi 0, %s311
      %s312 = sphi 0, %s309
      %s313 = sphi 0, %s312
      %s329 = sphi 0, %s313
    $region4: #{tpu_custom_call.1} parent=1 // loop_header_branch
      %24 = sbr.rel (%p22) target = $region8
    $region5: #{tpu_custom_call.1} parent=1 // loop_body
      %s26 = ssub.s32 %s21, 1
      %s27 = ssub.s32 %s21, 2
      %s28 = sadd.s32 %s21, 1
      %s29 = ssub.s32 %s21, %s28
      %p30 = scmp.eq.s32.totalorder %s29, 0
      %s32 = sadd.s32 %s31, 1
      %s33 = scalar_select %p30, %s31, %s32
      %p36 = pneg %p30
      %p37 = scmp.eq.s32.totalorder %s21, 1
      %p38 = por %p36, %p37
      %p39 = scmp.ne.s32.totalorder %s31, %s34
      %p40 = scmp.eq.s32.totalorder %s21, 0
      %p41 = por %p39, %p40
      %p42 = scmp.ne.s32.totalorder %s31, %s34
      %p43 = scmp.eq.s32.totalorder %s26, 1
      %p44 = por %p42, %p43
      %p45 = scmp.ne.s32.totalorder %s34, %s35
      %p46 = scmp.eq.s32.totalorder %s26, 0
      %p47 = por %p45, %p46
      %p48 = scmp.ne.s32.totalorder %s34, %s35
      %p49 = scmp.eq.s32.totalorder %s27, 1
      %p50 = por %p48, %p49
      %p52 = scmp.ne.s32.totalorder %s35, %s51
      %p53 = scmp.eq.s32.totalorder %s27, 0
      %p54 = por %p52, %p53
      %s56 = sadd.s32 %s55, 1
      %p59 = scmp.eq.s32.totalorder %s21, 1
      %p60 = scmp.ne.s32.totalorder %s55, %s57
      %p61 = scmp.eq.s32.totalorder %s21, 0
      %p62 = por %p60, %p61
      %p63 = scmp.ne.s32.totalorder %s55, %s57
      %p64 = scmp.eq.s32.totalorder %s26, 1
      %p65 = por %p63, %p64
      %p66 = scmp.ne.s32.totalorder %s57, %s58
      %p67 = scmp.eq.s32.totalorder %s26, 0
      %p68 = por %p66, %p67
      %p69 = scmp.ne.s32.totalorder %s57, %s58
      %p70 = scmp.eq.s32.totalorder %s27, 1
      %p71 = por %p69, %p70
      %p73 = scmp.ne.s32.totalorder %s58, %s72
      %p74 = scmp.eq.s32.totalorder %s27, 0
      %p75 = por %p73, %p74
      %s77 = sadd.s32 %s76, 1
      %p80 = scmp.eq.s32.totalorder %s21, 1
      %p81 = scmp.ne.s32.totalorder %s76, %s78
      %p82 = scmp.eq.s32.totalorder %s21, 0
      %p83 = por %p81, %p82
      %p84 = scmp.ne.s32.totalorder %s76, %s78
      %p85 = scmp.eq.s32.totalorder %s26, 1
      %p86 = por %p84, %p85
      %p87 = scmp.ne.s32.totalorder %s78, %s79
      %p88 = scmp.eq.s32.totalorder %s26, 0
      %p89 = por %p87, %p88
      %p90 = scmp.ne.s32.totalorder %s78, %s79
      %p91 = scmp.eq.s32.totalorder %s27, 1
      %p92 = por %p90, %p91
      %p94 = scmp.ne.s32.totalorder %s79, %s93
      %p95 = scmp.eq.s32.totalorder %s27, 0
      %p96 = por %p94, %p95
      %s98 = sadd.s32 %s97, 1
      %p101 = scmp.eq.s32.totalorder %s21, 1
      %p102 = scmp.ne.s32.totalorder %s97, %s99
      %p103 = scmp.eq.s32.totalorder %s21, 0
      %p104 = por %p102, %p103
      %p105 = scmp.ne.s32.totalorder %s97, %s99
      %p106 = scmp.eq.s32.totalorder %s26, 1
      %p107 = por %p105, %p106
      %p108 = scmp.ne.s32.totalorder %s99, %s100
      %p109 = scmp.eq.s32.totalorder %s26, 0
      %p110 = por %p108, %p109
      %p111 = scmp.ne.s32.totalorder %s99, %s100
      %p112 = scmp.eq.s32.totalorder %s27, 1
      %p113 = por %p111, %p112
      %p115 = scmp.ne.s32.totalorder %s100, %s114
      %p116 = scmp.eq.s32.totalorder %s27, 0
      %p117 = por %p115, %p116
      %s119 = sadd.s32 %s118, 1
      %p122 = scmp.eq.s32.totalorder %s21, 1
      %p123 = scmp.ne.s32.totalorder %s118, %s120
      %p124 = scmp.eq.s32.totalorder %s21, 0
      %p125 = por %p123, %p124
      %p126 = scmp.ne.s32.totalorder %s118, %s120
      %p127 = scmp.eq.s32.totalorder %s26, 1
      %p128 = por %p126, %p127
      %p129 = scmp.ne.s32.totalorder %s120, %s121
      %p130 = scmp.eq.s32.totalorder %s26, 0
      %p131 = por %p129, %p130
      %p132 = scmp.ne.s32.totalorder %s120, %s121
      %p133 = scmp.eq.s32.totalorder %s27, 1
      %p134 = por %p132, %p133
      %p136 = scmp.ne.s32.totalorder %s121, %s135
      %p137 = scmp.eq.s32.totalorder %s27, 0
      %p138 = por %p136, %p137
      %s140 = sadd.s32 %s139, 1
      %p143 = scmp.eq.s32.totalorder %s21, 1
      %p144 = scmp.ne.s32.totalorder %s139, %s141
      %p145 = scmp.eq.s32.totalorder %s21, 0
      %p146 = por %p144, %p145
      %p147 = scmp.ne.s32.totalorder %s139, %s141
      %p148 = scmp.eq.s32.totalorder %s26, 1
      %p149 = por %p147, %p148
      %p150 = scmp.ne.s32.totalorder %s141, %s142
      %p151 = scmp.eq.s32.totalorder %s26, 0
      %p152 = por %p150, %p151
      %p153 = scmp.ne.s32.totalorder %s141, %s142
      %p154 = scmp.eq.s32.totalorder %s27, 1
      %p155 = por %p153, %p154
      %p157 = scmp.ne.s32.totalorder %s142, %s156
      %p158 = scmp.eq.s32.totalorder %s27, 0
      %p159 = por %p157, %p158
      %s161 = sadd.s32 %s160, 1
      %p164 = scmp.eq.s32.totalorder %s21, 1
      %p165 = scmp.ne.s32.totalorder %s160, %s162
      %p166 = scmp.eq.s32.totalorder %s21, 0
      %p167 = por %p165, %p166
      %p168 = scmp.ne.s32.totalorder %s160, %s162
      %p169 = scmp.eq.s32.totalorder %s26, 1
      %p170 = por %p168, %p169
      %p171 = scmp.ne.s32.totalorder %s162, %s163
      %p172 = scmp.eq.s32.totalorder %s26, 0
      %p173 = por %p171, %p172
      %p174 = scmp.ne.s32.totalorder %s162, %s163
      %p175 = scmp.eq.s32.totalorder %s27, 1
      %p176 = por %p174, %p175
      %p178 = scmp.ne.s32.totalorder %s163, %s177
      %p179 = scmp.eq.s32.totalorder %s27, 0
      %p180 = por %p178, %p179
      %s182 = sadd.s32 %s181, 1
      %p185 = scmp.eq.s32.totalorder %s21, 1
      %p186 = scmp.ne.s32.totalorder %s181, %s183
      %p187 = scmp.eq.s32.totalorder %s21, 0
      %p188 = por %p186, %p187
      %p189 = scmp.ne.s32.totalorder %s181, %s183
      %p190 = scmp.eq.s32.totalorder %s26, 1
      %p191 = por %p189, %p190
      %p192 = scmp.ne.s32.totalorder %s183, %s184
      %p193 = scmp.eq.s32.totalorder %s26, 0
      %p194 = por %p192, %p193
      %p195 = scmp.ne.s32.totalorder %s183, %s184
      %p196 = scmp.eq.s32.totalorder %s27, 1
      %p197 = por %p195, %p196
      %p199 = scmp.ne.s32.totalorder %s184, %s198
      %p200 = scmp.eq.s32.totalorder %s27, 0
      %p201 = por %p199, %p200
      %s203 = sadd.s32 %s202, 1
      %p206 = scmp.eq.s32.totalorder %s21, 1
      %p207 = scmp.ne.s32.totalorder %s202, %s204
      %p208 = scmp.eq.s32.totalorder %s21, 0
      %p209 = por %p207, %p208
      %p210 = scmp.ne.s32.totalorder %s202, %s204
      %p211 = scmp.eq.s32.totalorder %s26, 1
      %p212 = por %p210, %p211
      %p213 = scmp.ne.s32.totalorder %s204, %s205
      %p214 = scmp.eq.s32.totalorder %s26, 0
      %p215 = por %p213, %p214
      %p216 = scmp.ne.s32.totalorder %s204, %s205
      %p217 = scmp.eq.s32.totalorder %s27, 1
      %p218 = por %p216, %p217
      %p220 = scmp.ne.s32.totalorder %s205, %s219
      %p221 = scmp.eq.s32.totalorder %s27, 0
      %p222 = por %p220, %p221
      %s224 = sadd.s32 %s223, 1
      %p227 = scmp.eq.s32.totalorder %s21, 1
      %p228 = scmp.ne.s32.totalorder %s223, %s225
      %p229 = scmp.eq.s32.totalorder %s21, 0
      %p230 = por %p228, %p229
      %p231 = scmp.ne.s32.totalorder %s223, %s225
      %p232 = scmp.eq.s32.totalorder %s26, 1
      %p233 = por %p231, %p232
      %p234 = scmp.ne.s32.totalorder %s225, %s226
      %p235 = scmp.eq.s32.totalorder %s26, 0
      %p236 = por %p234, %p235
      %p237 = scmp.ne.s32.totalorder %s225, %s226
      %p238 = scmp.eq.s32.totalorder %s27, 1
      %p239 = por %p237, %p238
      %p241 = scmp.ne.s32.totalorder %s226, %s240
      %p242 = scmp.eq.s32.totalorder %s27, 0
      %p243 = por %p241, %p242
      %s245 = sadd.s32 %s244, 1
      %p248 = scmp.eq.s32.totalorder %s21, 1
      %p249 = scmp.ne.s32.totalorder %s244, %s246
      %p250 = scmp.eq.s32.totalorder %s21, 0
      %p251 = por %p249, %p250
      %p252 = scmp.ne.s32.totalorder %s244, %s246
      %p253 = scmp.eq.s32.totalorder %s26, 1
      %p254 = por %p252, %p253
      %p255 = scmp.ne.s32.totalorder %s246, %s247
      %p256 = scmp.eq.s32.totalorder %s26, 0
      %p257 = por %p255, %p256
      %p258 = scmp.ne.s32.totalorder %s246, %s247
      %p259 = scmp.eq.s32.totalorder %s27, 1
      %p260 = por %p258, %p259
      %p262 = scmp.ne.s32.totalorder %s247, %s261
      %p263 = scmp.eq.s32.totalorder %s27, 0
      %p264 = por %p262, %p263
      %s266 = sadd.s32 %s265, 1
      %p269 = scmp.eq.s32.totalorder %s21, 1
      %p270 = scmp.ne.s32.totalorder %s265, %s267
      %p271 = scmp.eq.s32.totalorder %s21, 0
      %p272 = por %p270, %p271
      %p273 = scmp.ne.s32.totalorder %s265, %s267
      %p274 = scmp.eq.s32.totalorder %s26, 1
      %p275 = por %p273, %p274
      %p276 = scmp.ne.s32.totalorder %s267, %s268
      %p277 = scmp.eq.s32.totalorder %s26, 0
      %p278 = por %p276, %p277
      %p279 = scmp.ne.s32.totalorder %s267, %s268
      %p280 = scmp.eq.s32.totalorder %s27, 1
      %p281 = por %p279, %p280
      %p283 = scmp.ne.s32.totalorder %s268, %s282
      %p284 = scmp.eq.s32.totalorder %s27, 0
      %p285 = por %p283, %p284
      %s287 = sadd.s32 %s286, 1
      %p290 = scmp.eq.s32.totalorder %s21, 1
      %p291 = scmp.ne.s32.totalorder %s286, %s288
      %p292 = scmp.eq.s32.totalorder %s21, 0
      %p293 = por %p291, %p292
      %p294 = scmp.ne.s32.totalorder %s286, %s288
      %p295 = scmp.eq.s32.totalorder %s26, 1
      %p296 = por %p294, %p295
      %p297 = scmp.ne.s32.totalorder %s288, %s289
      %p298 = scmp.eq.s32.totalorder %s26, 0
      %p299 = por %p297, %p298
      %p300 = scmp.ne.s32.totalorder %s288, %s289
      %p301 = scmp.eq.s32.totalorder %s27, 1
      %p302 = por %p300, %p301
      %p304 = scmp.ne.s32.totalorder %s289, %s303
      %p305 = scmp.eq.s32.totalorder %s27, 0
      %p306 = por %p304, %p305
      %s307 = ssub.s32 %s21, %s28
      %p308 = scmp.eq.s32.totalorder %s307, 0
      %s310 = sadd.s32 %s309, 1
      %s311 = scalar_select %p308, %s309, %s310
      %p314 = pneg %p308
      %p315 = scmp.eq.s32.totalorder %s21, 1
      %p316 = por %p314, %p315
      %p317 = scmp.ne.s32.totalorder %s309, %s312
      %p318 = scmp.eq.s32.totalorder %s21, 0
      %p319 = por %p317, %p318
      %p320 = scmp.ne.s32.totalorder %s309, %s312
      %p321 = scmp.eq.s32.totalorder %s26, 1
      %p322 = por %p320, %p321
      %p323 = scmp.ne.s32.totalorder %s312, %s313
      %p324 = scmp.eq.s32.totalorder %s26, 0
      %p325 = por %p323, %p324
      %p326 = scmp.ne.s32.totalorder %s312, %s313
      %p327 = scmp.eq.s32.totalorder %s27, 1
      %p328 = por %p326, %p327
      %p330 = scmp.ne.s32.totalorder %s313, %s329
      %p331 = scmp.eq.s32.totalorder %s27, 0
      %p332 = por %p330, %p331
      %p333 = scmp.le.s32.totalorder 1, %s21
      %p334 = scmp.lt.s32.totalorder %s21, 3
      %p335 = pnand %p333, %p334
      %p336 = pneg %p335
      // Predicated region
      $region9: #{tpu_custom_call.1} parent=5 // pred_check
        _
      $region10: #{tpu_custom_call.1} parent=5 // pred_check_branch
        %338 = sbr.rel (%p335) target = $region12
      $region11: #{tpu_custom_call.1} parent=5 // pred_region
        %s339 = ssub.s32 %s21, 1
        // Predicated region
        $region13: #{tpu_custom_call.1} parent=11 // pred_check
          %p340 = pneg %p68
        $region14: #{tpu_custom_call.1} parent=11 // pred_check_branch
          %342 = sbr.rel (%p340) target = $region16
        $region15: #{tpu_custom_call.1} parent=11 // pred_region
          _
        $region16: #{tpu_custom_call.1} parent=11 // pred_fallthru
          _
        // Predicated region
        $region17: #{tpu_custom_call.1} parent=11 // pred_check
          %p343 = pneg %p89
        $region18: #{tpu_custom_call.1} parent=11 // pred_check_branch
          %345 = sbr.rel (%p343) target = $region20
        $region19: #{tpu_custom_call.1} parent=11 // pred_region
          %s347 = ssub.s32 32, 32
          %348 = vsyncadd [#allocation3], %s347
          %s350 = sshll.u32 [#allocation2], 4
          %s351 = int_to_ptr.vmem [resolvable:$true] %s350
          %353 = dma.hbm_to_vmem [thread:$0]  %s2, 32, %s351, [#allocation3]
        $region20: #{tpu_custom_call.1} parent=11 // pred_fallthru
          _
        // Predicated region
        $region21: #{tpu_custom_call.1} parent=11 // pred_check
          %p354 = pneg %p110
        $region22: #{tpu_custom_call.1} parent=11 // pred_check_branch
          %356 = sbr.rel (%p354) target = $region24
        $region23: #{tpu_custom_call.1} parent=11 // pred_region
          _
        $region24: #{tpu_custom_call.1} parent=11 // pred_fallthru
          _
        // Predicated region
        $region25: #{tpu_custom_call.1} parent=11 // pred_check
          %p357 = pneg %p131
        $region26: #{tpu_custom_call.1} parent=11 // pred_check_branch
          %359 = sbr.rel (%p357) target = $region28
        $region27: #{tpu_custom_call.1} parent=11 // pred_region
          _
        $region28: #{tpu_custom_call.1} parent=11 // pred_fallthru
          _
        // Predicated region
        $region29: #{tpu_custom_call.1} parent=11 // pred_check
          %p360 = pneg %p152
        $region30: #{tpu_custom_call.1} parent=11 // pred_check_branch
          %362 = sbr.rel (%p360) target = $region32
        $region31: #{tpu_custom_call.1} parent=11 // pred_region
          _
        $region32: #{tpu_custom_call.1} parent=11 // pred_fallthru
          _
        // Predicated region
        $region33: #{tpu_custom_call.1} parent=11 // pred_check
          %p363 = pneg %p173
        $region34: #{tpu_custom_call.1} parent=11 // pred_check_branch
          %365 = sbr.rel (%p363) target = $region36
        $region35: #{tpu_custom_call.1} parent=11 // pred_region
          _
        $region36: #{tpu_custom_call.1} parent=11 // pred_fallthru
          _
        // Predicated region
        $region37: #{tpu_custom_call.1} parent=11 // pred_check
          %p366 = pneg %p194
        $region38: #{tpu_custom_call.1} parent=11 // pred_check_branch
          %368 = sbr.rel (%p366) target = $region40
        $region39: #{tpu_custom_call.1} parent=11 // pred_region
          _
        $region40: #{tpu_custom_call.1} parent=11 // pred_fallthru
          _
        // Predicated region
        $region41: #{tpu_custom_call.1} parent=11 // pred_check
          %p369 = pneg %p215
        $region42: #{tpu_custom_call.1} parent=11 // pred_check_branch
          %371 = sbr.rel (%p369) target = $region44
        $region43: #{tpu_custom_call.1} parent=11 // pred_region
          _
        $region44: #{tpu_custom_call.1} parent=11 // pred_fallthru
          _
        // Predicated region
        $region45: #{tpu_custom_call.1} parent=11 // pred_check
          %p372 = pneg %p236
        $region46: #{tpu_custom_call.1} parent=11 // pred_check_branch
          %374 = sbr.rel (%p372) target = $region48
        $region47: #{tpu_custom_call.1} parent=11 // pred_region
          _
        $region48: #{tpu_custom_call.1} parent=11 // pred_fallthru
          _
        // Predicated region
        $region49: #{tpu_custom_call.1} parent=11 // pred_check
          %p375 = pneg %p257
        $region50: #{tpu_custom_call.1} parent=11 // pred_check_branch
          %377 = sbr.rel (%p375) target = $region52
        $region51: #{tpu_custom_call.1} parent=11 // pred_region
          _
        $region52: #{tpu_custom_call.1} parent=11 // pred_fallthru
          _
        // Predicated region
        $region53: #{tpu_custom_call.1} parent=11 // pred_check
          %p378 = pneg %p278
        $region54: #{tpu_custom_call.1} parent=11 // pred_check_branch
          %380 = sbr.rel (%p378) target = $region56
        $region55: #{tpu_custom_call.1} parent=11 // pred_region
          %s382 = ssub.s32 1024, 1024
          %383 = vsyncadd [#allocation5], %s382
          %s384 = sshll.u32 [#allocation4], 4
          %s385 = int_to_ptr.vmem [resolvable:$true] %s384
          %390 = dma.hbm_to_vmem [thread:$0]  %s11, 1024, %s385, [#allocation5], 64, 64, 4
        $region56: #{tpu_custom_call.1} parent=11 // pred_fallthru
          _
        // Predicated region
        $region57: #{tpu_custom_call.1} parent=11 // pred_check
          %p391 = pneg %p299
        $region58: #{tpu_custom_call.1} parent=11 // pred_check_branch
          %393 = sbr.rel (%p391) target = $region60
        $region59: #{tpu_custom_call.1} parent=11 // pred_region
          _
        $region60: #{tpu_custom_call.1} parent=11 // pred_fallthru
          _
      $region12: #{tpu_custom_call.1} parent=5 // pred_fallthru
        _
      %p394 = scmp.lt.s32.totalorder %s21, 2
      // Predicated region
      $region61: #{tpu_custom_call.1} parent=5 // pred_check
        %p395 = pneg %p394
      $region62: #{tpu_custom_call.1} parent=5 // pred_check_branch
        %397 = sbr.rel (%p395) target = $region64
      $region63: #{tpu_custom_call.1} parent=5 // pred_region
        // Predicated region
        $region65: #{tpu_custom_call.1} parent=63 // pred_check
          %p398 = pneg %p41
        $region66: #{tpu_custom_call.1} parent=63 // pred_check_branch
          %400 = sbr.rel (%p398) target = $region68
        $region67: #{tpu_custom_call.1} parent=63 // pred_region
          %s401 = smul.u32 16, %s21
          %p402 = scmp.lt.s32.totalorder %s401, 31
          %s403 = scalar_select %p402, %s401, 31
          %s404 = smul.addr %s403, 8
          %s405 = scalar_lea.vmem %s0, %s404
          %s406 = smul.u32 16, %s21
        $region68: #{tpu_custom_call.1} parent=63 // pred_fallthru
          _
      $region64: #{tpu_custom_call.1} parent=5 // pred_fallthru
        _
      %p407 = scmp.le.s32.totalorder 1, %s21
      %p408 = scmp.lt.s32.totalorder %s21, 3
      %p409 = pnand %p407, %p408
      %p410 = pneg %p409
      // Predicated region
      $region69: #{tpu_custom_call.1} parent=5 // pred_check
        _
      $region70: #{tpu_custom_call.1} parent=5 // pred_check_branch
        %412 = sbr.rel (%p409) target = $region72
      $region71: #{tpu_custom_call.1} parent=5 // pred_region
        %s413 = ssub.s32 %s21, 1
        // Predicated region
        $region73: #{tpu_custom_call.1} parent=71 // pred_check
          %p414 = pneg %p89
        $region74: #{tpu_custom_call.1} parent=71 // pred_check_branch
          %416 = sbr.rel (%p414) target = $region76
        $region75: #{tpu_custom_call.1} parent=71 // pred_region
          %417 = dma.done [#allocation3], 32
        $region76: #{tpu_custom_call.1} parent=71 // pred_fallthru
          _
        // Predicated region
        $region77: #{tpu_custom_call.1} parent=71 // pred_check
          %p418 = pneg %p278
        $region78: #{tpu_custom_call.1} parent=71 // pred_check_branch
          %420 = sbr.rel (%p418) target = $region80
        $region79: #{tpu_custom_call.1} parent=71 // pred_region
          %421 = dma.done [#allocation5], 1024
        $region80: #{tpu_custom_call.1} parent=71 // pred_fallthru
          _
        %s422 = smul.u32 16, %s26
        %p423 = scmp.lt.s32.totalorder %s422, 31
        %s424 = scalar_select %p423, %s422, 31
        %s425 = smul.addr %s424, 8
        %s426 = scalar_lea.vmem %s0, %s425
        %p427 = pneg %p47
        %p428 = pneg %p44
        %p429 = pneg %p68
        %p430 = pneg %p65
        %p431 = pneg %p89
        %p432 = pneg %p86
        %p433 = pneg %p110
        %p434 = pneg %p107
        %p435 = pneg %p131
        %p436 = pneg %p128
        %p437 = pneg %p152
        %p438 = pneg %p149
        %p439 = pneg %p173
        %p440 = pneg %p170
        %p441 = pneg %p194
        %p442 = pneg %p191
        %p443 = pneg %p215
        %p444 = pneg %p212
        %p445 = pneg %p236
        %p446 = pneg %p233
        %p447 = pneg %p257
        %p448 = pneg %p254
        %p449 = pneg %p278
        %p450 = pneg %p275
        %p451 = pneg %p299
        %p452 = pneg %p296
        %p453 = pneg %p325
        %p454 = pneg %p322
        %s455 = smul.u32 16, %s26
        %p456 = scmp.lt.s32.totalorder %s455, 31
        %s457 = scalar_select %p456, %s455, 31
        %s458 = smul.addr %s457, 8
        %s459 = scalar_lea.vmem %s13, %s458
        %s460 = smul.u32 16, %s26
        %p461 = scmp.lt.s32.totalorder %s460, 31
        %s462 = scalar_select %p461, %s460, 31
        %s463 = smul.addr %s462, 8
        %s464 = scalar_lea.vmem %s0, %s463
        %s465 = smul.u32 16, %s26
        %s466 = smul.u32 16, %s26
        %p467 = scmp.lt.s32.totalorder %s466, 31
        %s468 = scalar_select %p467, %s466, 31
        %s469 = smul.addr %s468, 8
        %s470 = scalar_lea.vmem %s13, %s469
        %s471 = smul.u32 16, %s26
        %v473 = vld [vmem:[%s464] sm:$0xff]
        %v474 = vld [vmem:[%s464 + $0x8] sm:$0xff]
        %v475 = vld [vmem:[%s464 + $0x10] sm:$0xff]
        %v476 = vld [vmem:[%s464 + $0x18] sm:$0xff]
        %v477 = vld [vmem:[%s464 + $0x20] sm:$0xff]
        %v478 = vld [vmem:[%s464 + $0x28] sm:$0xff]
        %v479 = vld [vmem:[%s464 + $0x30] sm:$0xff]
        %v480 = vld [vmem:[%s464 + $0x38] sm:$0xff]
        %v481 = vld [vmem:[%s464 + $0x40] sm:$0xff]
        %v482 = vld [vmem:[%s464 + $0x48] sm:$0xff]
        %v483 = vld [vmem:[%s464 + $0x50] sm:$0xff]
        %v484 = vld [vmem:[%s464 + $0x58] sm:$0xff]
        %v485 = vld [vmem:[%s464 + $0x60] sm:$0xff]
        %v486 = vld [vmem:[%s464 + $0x68] sm:$0xff]
        %v487 = vld [vmem:[%s464 + $0x70] sm:$0xff]
        %v488 = vld [vmem:[%s464 + $0x78] sm:$0xff]
        %v489 = vpack.c.bf16 %v474, %v473
        %v490 = vpack.c.bf16 %v476, %v475
        %v491 = vpack.c.bf16 %v478, %v477
        %v492 = vpack.c.bf16 %v480, %v479
        %v493 = vpack.c.bf16 %v482, %v481
        %v494 = vpack.c.bf16 %v484, %v483
        %v495 = vpack.c.bf16 %v486, %v485
        %v496 = vpack.c.bf16 %v488, %v487
        %v497 = vld [vmem:[%s1] sm:$0xff]
        %v498 = vld [vmem:[%s1 + $0x8] sm:$0xff]
        %v499 = vld [vmem:[%s1 + $0x10] sm:$0xff]
        %v500 = vld [vmem:[%s1 + $0x18] sm:$0xff]
        %v501 = vld [vmem:[%s1 + $0x20] sm:$0xff]
        %v502 = vld [vmem:[%s1 + $0x28] sm:$0xff]
        %v503 = vld [vmem:[%s1 + $0x30] sm:$0xff]
        %v504 = vld [vmem:[%s1 + $0x38] sm:$0xff]
        %v505 = vld [vmem:[#allocation2] sm:$0x3]
        %v507 = vlaneseq
        %v508 = vshrl.u32 %v507, 7
        %v509 = vsub.s32 0, %v508
        %v510 = vrot.slane %v505, %v509
        %v511 = vlaneseq
        %v512 = vshrl.u32 %v511, 7
        %v513 = vsub.s32 1, %v512
        %v514 = vrot.slane %v505, %v513
        %v525 = vunpack.c.l.b16 %v497
        %v526 = vunpack.c.h.b16 %v497
        %v527 = vunpack.c.l.b16 %v498
        %v528 = vunpack.c.h.b16 %v498
        %v529 = vunpack.c.l.b16 %v499
        %v530 = vunpack.c.h.b16 %v499
        %v531 = vunpack.c.l.b16 %v500
        %v532 = vunpack.c.h.b16 %v500
        %v533 = vunpack.c.l.b16 %v501
        %v534 = vunpack.c.h.b16 %v501
        %v535 = vunpack.c.l.b16 %v502
        %v536 = vunpack.c.h.b16 %v502
        %v537 = vunpack.c.l.b16 %v503
        %v538 = vunpack.c.h.b16 %v503
        %v539 = vunpack.c.l.b16 %v504
        %v540 = vunpack.c.h.b16 %v504
        %v541 = vpack.c.b16 %v527, %v525
        %v542 = vpack.c.b16 %v528, %v526
        %v543 = vpack.c.b16 %v531, %v529
        %v544 = vpack.c.b16 %v532, %v530
        %v545 = vpack.c.b16 %v535, %v533
        %v546 = vpack.c.b16 %v536, %v534
        %v547 = vpack.c.b16 %v539, %v537
        %v548 = vpack.c.b16 %v540, %v538
        %vm557 = vcmask 523264
        %v559 = vsel %vm557, %v489, 0
        %v562 = vsel %vm557, %v490, 0
        %v565 = vsel %vm557, %v491, 0
        %v568 = vsel %vm557, %v492, 0
        %v571 = vsel %vm557, %v493, 0
        %v574 = vsel %vm557, %v494, 0
        %v577 = vsel %vm557, %v495, 0
        %v580 = vsel %vm557, %v496, 0
        %582 = vmatprep.subr.bf16.mxu0 0
        %583 = vmatpush1.bf16.msra.mxu0 0
        %584 = vmatprep.subr.bf16.mxu0 0
        %585 = vmatpush1.bf16.msra.mxu0 0
        %586 = vmatprep.subr.bf16.mxu0 0
        %587 = vmatpush1.bf16.msra.mxu0 0
        %588 = vmatprep.subr.bf16.mxu0 0
        %589 = vmatpush1.bf16.msra.mxu0 0
        %590 = vmatprep.subr.bf16.mxu0 %v548
        %591 = vmatpush1.bf16.msra.mxu0 %v547
        %592 = vmatprep.subr.bf16.mxu0 %v546
        %593 = vmatpush1.bf16.msra.mxu0 %v545
        %594 = vmatprep.subr.bf16.mxu0 %v544
        %595 = vmatpush1.bf16.msra.mxu0 %v543
        %596 = vmatprep.subr.bf16.mxu0 %v542
        %597 = vmatpush1.bf16.msra.mxu0 %v541
        %598 = vmatprep.subr.bf16.mxu0 0
        %599 = vmatpush2.bf16.msra.mxu0 0
        %600 = vmatprep.subr.bf16.mxu0 0
        %601 = vmatpush2.bf16.msra.mxu0 0
        %602 = vmatprep.subr.bf16.mxu0 0
        %603 = vmatpush2.bf16.msra.mxu0 0
        %604 = vmatprep.subr.bf16.mxu0 0
        %605 = vmatpush2.bf16.msra.mxu0 0
        %606 = vmatprep.subr.bf16.mxu0 0
        %607 = vmatpush2.bf16.msra.mxu0 0
        %608 = vmatprep.subr.bf16.mxu0 0
        %609 = vmatpush2.bf16.msra.mxu0 0
        %610 = vmatprep.subr.bf16.mxu0 0
        %611 = vmatpush2.bf16.msra.mxu0 0
        %612 = vmatprep.subr.bf16.mxu0 0
        %613 = vmatpush2.bf16.msra.mxu0 0
        %614 = vmatprep.mubr.bf16.mxu0 0
        %615 = vmatmul.mubr.bf16.gmra.mxu0 %v559
        %v616 = vpop.f32.mrf.mxu0
        %v617 = vadd.f32 %v510, %v616
        %v618 = vpop.f32.mrf.mxu0
        %v619 = vadd.f32 %v514, %v618
        %v620 = vpop.f32.mrf.mxu0
        %v621 = vadd.f32 %v510, %v620
        %v622 = vpop.f32.mrf.mxu0
        %v623 = vadd.f32 %v514, %v622
        %624 = vmatprep.mubr.bf16.mxu0 0
        %625 = vmatmul.mubr.bf16.gmra.mxu0 %v562
        %v626 = vpop.f32.mrf.mxu0
        %v627 = vadd.f32 %v510, %v626
        %v628 = vpop.f32.mrf.mxu0
        %v629 = vadd.f32 %v514, %v628
        %v630 = vpop.f32.mrf.mxu0
        %v631 = vadd.f32 %v510, %v630
        %v632 = vpop.f32.mrf.mxu0
        %v633 = vadd.f32 %v514, %v632
        %634 = vmatprep.mubr.bf16.mxu0 0
        %635 = vmatmul.mubr.bf16.gmra.mxu0 %v565
        %v636 = vpop.f32.mrf.mxu0
        %v637 = vadd.f32 %v510, %v636
        %v638 = vpop.f32.mrf.mxu0
        %v639 = vadd.f32 %v514, %v638
        %v640 = vpop.f32.mrf.mxu0
        %v641 = vadd.f32 %v510, %v640
        %v642 = vpop.f32.mrf.mxu0
        %v643 = vadd.f32 %v514, %v642
        %644 = vmatprep.mubr.bf16.mxu0 0
        %645 = vmatmul.mubr.bf16.gmra.mxu0 %v568
        %v646 = vpop.f32.mrf.mxu0
        %v647 = vadd.f32 %v510, %v646
        %v648 = vpop.f32.mrf.mxu0
        %v649 = vadd.f32 %v514, %v648
        %v650 = vpop.f32.mrf.mxu0
        %v651 = vadd.f32 %v510, %v650
        %v652 = vpop.f32.mrf.mxu0
        %v653 = vadd.f32 %v514, %v652
        %654 = vmatprep.mubr.bf16.mxu0 0
        %655 = vmatmul.mubr.bf16.gmra.mxu0 %v571
        %v656 = vpop.f32.mrf.mxu0
        %v657 = vadd.f32 %v510, %v656
        %v658 = vpop.f32.mrf.mxu0
        %v659 = vadd.f32 %v514, %v658
        %v660 = vpop.f32.mrf.mxu0
        %v661 = vadd.f32 %v510, %v660
        %v662 = vpop.f32.mrf.mxu0
        %v663 = vadd.f32 %v514, %v662
        %664 = vmatprep.mubr.bf16.mxu0 0
        %665 = vmatmul.mubr.bf16.gmra.mxu0 %v574
        %v666 = vpop.f32.mrf.mxu0
        %v667 = vadd.f32 %v510, %v666
        %v668 = vpop.f32.mrf.mxu0
        %v669 = vadd.f32 %v514, %v668
        %v670 = vpop.f32.mrf.mxu0
        %v671 = vadd.f32 %v510, %v670
        %v672 = vpop.f32.mrf.mxu0
        %v673 = vadd.f32 %v514, %v672
        %674 = vmatprep.mubr.bf16.mxu0 0
        %675 = vmatmul.mubr.bf16.gmra.mxu0 %v577
        %v676 = vpop.f32.mrf.mxu0
        %v677 = vadd.f32 %v510, %v676
        %v678 = vpop.f32.mrf.mxu0
        %v679 = vadd.f32 %v514, %v678
        %v680 = vpop.f32.mrf.mxu0
        %v681 = vadd.f32 %v510, %v680
        %v682 = vpop.f32.mrf.mxu0
        %v683 = vadd.f32 %v514, %v682
        %684 = vmatprep.mubr.bf16.mxu0 0
        %685 = vmatmul.mubr.bf16.gmra.mxu0 %v580
        %v686 = vpop.f32.mrf.mxu0
        %v687 = vadd.f32 %v510, %v686
        %v688 = vpop.f32.mrf.mxu0
        %v689 = vadd.f32 %v514, %v688
        %v690 = vpop.f32.mrf.mxu0
        %v691 = vadd.f32 %v510, %v690
        %v692 = vpop.f32.mrf.mxu0
        %v693 = vadd.f32 %v514, %v692
        %694 = vdwg.mxu0
        %v695 = vmax.f32 %v617, 0.0
        %v696 = vmax.f32 %v619, 0.0
        %v697 = vmax.f32 %v621, 0.0
        %v698 = vmax.f32 %v623, 0.0
        %v699 = vmax.f32 %v627, 0.0
        %v700 = vmax.f32 %v629, 0.0
        %v701 = vmax.f32 %v631, 0.0
        %v702 = vmax.f32 %v633, 0.0
        %v703 = vmax.f32 %v637, 0.0
        %v704 = vmax.f32 %v639, 0.0
        %v705 = vmax.f32 %v641, 0.0
        %v706 = vmax.f32 %v643, 0.0
        %v707 = vmax.f32 %v647, 0.0
        %v708 = vmax.f32 %v649, 0.0
        %v709 = vmax.f32 %v651, 0.0
        %v710 = vmax.f32 %v653, 0.0
        %v711 = vmax.f32 %v657, 0.0
        %v712 = vmax.f32 %v659, 0.0
        %v713 = vmax.f32 %v661, 0.0
        %v714 = vmax.f32 %v663, 0.0
        %v715 = vmax.f32 %v667, 0.0
        %v716 = vmax.f32 %v669, 0.0
        %v717 = vmax.f32 %v671, 0.0
        %v718 = vmax.f32 %v673, 0.0
        %v719 = vmax.f32 %v677, 0.0
        %v720 = vmax.f32 %v679, 0.0
        %v721 = vmax.f32 %v681, 0.0
        %v722 = vmax.f32 %v683, 0.0
        %v723 = vmax.f32 %v687, 0.0
        %v724 = vmax.f32 %v689, 0.0
        %v725 = vmax.f32 %v691, 0.0
        %v726 = vmax.f32 %v693, 0.0
        %v727 = vpack.c.bf16 %v697, %v695
        %v728 = vpack.c.bf16 %v698, %v696
        %v729 = vpack.c.bf16 %v701, %v699
        %v730 = vpack.c.bf16 %v702, %v700
        %v731 = vpack.c.bf16 %v705, %v703
        %v732 = vpack.c.bf16 %v706, %v704
        %v733 = vpack.c.bf16 %v709, %v707
        %v734 = vpack.c.bf16 %v710, %v708
        %v735 = vpack.c.bf16 %v713, %v711
        %v736 = vpack.c.bf16 %v714, %v712
        %v737 = vpack.c.bf16 %v717, %v715
        %v738 = vpack.c.bf16 %v718, %v716
        %v739 = vpack.c.bf16 %v721, %v719
        %v740 = vpack.c.bf16 %v722, %v720
        %v741 = vpack.c.bf16 %v725, %v723
        %v742 = vpack.c.bf16 %v726, %v724
        %v743 = vld [vmem:[%s3] sm:$0xf]
        %v744 = vld [vmem:[%s3 + $0x4] sm:$0xf]
        %v745 = vld [vmem:[%s3 + $0x8] sm:$0xf]
        %v746 = vld [vmem:[%s3 + $0xc] sm:$0xf]
        %v747 = vld [vmem:[%s3 + $0x10] sm:$0xf]
        %v748 = vld [vmem:[%s3 + $0x14] sm:$0xf]
        %v749 = vld [vmem:[%s3 + $0x18] sm:$0xf]
        %v750 = vld [vmem:[%s3 + $0x1c] sm:$0xf]
        %v751 = vld [vmem:[%s3 + $0x20] sm:$0xf]
        %v752 = vld [vmem:[%s3 + $0x24] sm:$0xf]
        %v753 = vld [vmem:[%s3 + $0x28] sm:$0xf]
        %v754 = vld [vmem:[%s3 + $0x2c] sm:$0xf]
        %v755 = vld [vmem:[%s3 + $0x30] sm:$0xf]
        %v756 = vld [vmem:[%s3 + $0x34] sm:$0xf]
        %v757 = vld [vmem:[%s3 + $0x38] sm:$0xf]
        %v758 = vld [vmem:[%s3 + $0x3c] sm:$0xf]
        %v759 = vld [vmem:[%s3 + $0x40] sm:$0xf]
        %v760 = vld [vmem:[%s3 + $0x44] sm:$0xf]
        %v761 = vld [vmem:[%s3 + $0x48] sm:$0xf]
        %v762 = vld [vmem:[%s3 + $0x4c] sm:$0xf]
        %v763 = vld [vmem:[%s3 + $0x50] sm:$0xf]
        %v764 = vld [vmem:[%s3 + $0x54] sm:$0xf]
        %v765 = vld [vmem:[%s3 + $0x58] sm:$0xf]
        %v766 = vld [vmem:[%s3 + $0x5c] sm:$0xf]
        %v767 = vld [vmem:[%s3 + $0x60] sm:$0xf]
        %v768 = vld [vmem:[%s3 + $0x64] sm:$0xf]
        %v769 = vld [vmem:[%s3 + $0x68] sm:$0xf]
        %v770 = vld [vmem:[%s3 + $0x6c] sm:$0xf]
        %v771 = vld [vmem:[%s3 + $0x70] sm:$0xf]
        %v772 = vld [vmem:[%s3 + $0x74] sm:$0xf]
        %v773 = vld [vmem:[%s3 + $0x78] sm:$0xf]
        %v774 = vld [vmem:[%s3 + $0x7c] sm:$0xf]
        %v775 = vld [vmem:[%s4] sm:$0x1]
        %v777 = vlaneseq
        %v778 = vshrl.u32 %v777, 7
        %v779 = vsub.s32 0, %v778
        %v780 = vrot.slane %v775, %v779
        %v814 = vunpack.c.l.b16 %v743
        %v815 = vunpack.c.l.b16 %v744
        %v816 = vunpack.c.l.b16 %v745
        %v817 = vunpack.c.l.b16 %v746
        %v818 = vunpack.c.l.b16 %v747
        %v819 = vunpack.c.l.b16 %v748
        %v820 = vunpack.c.l.b16 %v749
        %v821 = vunpack.c.l.b16 %v750
        %v822 = vunpack.c.l.b16 %v751
        %v823 = vunpack.c.l.b16 %v752
        %v824 = vunpack.c.l.b16 %v753
        %v825 = vunpack.c.l.b16 %v754
        %v826 = vunpack.c.l.b16 %v755
        %v827 = vunpack.c.l.b16 %v756
        %v828 = vunpack.c.l.b16 %v757
        %v829 = vunpack.c.l.b16 %v758
        %v830 = vunpack.c.l.b16 %v759
        %v831 = vunpack.c.l.b16 %v760
        %v832 = vunpack.c.l.b16 %v761
        %v833 = vunpack.c.l.b16 %v762
        %v834 = vunpack.c.l.b16 %v763
        %v835 = vunpack.c.l.b16 %v764
        %v836 = vunpack.c.l.b16 %v765
        %v837 = vunpack.c.l.b16 %v766
        %v838 = vunpack.c.l.b16 %v767
        %v839 = vunpack.c.l.b16 %v768
        %v840 = vunpack.c.l.b16 %v769
        %v841 = vunpack.c.l.b16 %v770
        %v842 = vunpack.c.l.b16 %v771
        %v843 = vunpack.c.l.b16 %v772
        %v844 = vunpack.c.l.b16 %v773
        %v845 = vunpack.c.l.b16 %v774
        %v846 = vpack.c.b16 %v815, %v814
        %v847 = vpack.c.b16 %v817, %v816
        %v848 = vpack.c.b16 %v819, %v818
        %v849 = vpack.c.b16 %v821, %v820
        %v850 = vpack.c.b16 %v823, %v822
        %v851 = vpack.c.b16 %v825, %v824
        %v852 = vpack.c.b16 %v827, %v826
        %v853 = vpack.c.b16 %v829, %v828
        %v854 = vpack.c.b16 %v831, %v830
        %v855 = vpack.c.b16 %v833, %v832
        %v856 = vpack.c.b16 %v835, %v834
        %v857 = vpack.c.b16 %v837, %v836
        %v858 = vpack.c.b16 %v839, %v838
        %v859 = vpack.c.b16 %v841, %v840
        %v860 = vpack.c.b16 %v843, %v842
        %v861 = vpack.c.b16 %v845, %v844
        %878 = vmatprep.subr.bf16.mxu0 0
        %879 = vmatpush1.bf16.msra.mxu0 %v853
        %880 = vmatprep.subr.bf16.mxu0 0
        %881 = vmatpush1.bf16.msra.mxu0 %v852
        %882 = vmatprep.subr.bf16.mxu0 0
        %883 = vmatpush1.bf16.msra.mxu0 %v851
        %884 = vmatprep.subr.bf16.mxu0 0
        %885 = vmatpush1.bf16.msra.mxu0 %v850
        %886 = vmatprep.subr.bf16.mxu0 0
        %887 = vmatpush1.bf16.msra.mxu0 %v849
        %888 = vmatprep.subr.bf16.mxu0 0
        %889 = vmatpush1.bf16.msra.mxu0 %v848
        %890 = vmatprep.subr.bf16.mxu0 0
        %891 = vmatpush1.bf16.msra.mxu0 %v847
        %892 = vmatprep.subr.bf16.mxu0 0
        %893 = vmatpush1.bf16.msra.mxu0 %v846
        %894 = vmatprep.subr.bf16.mxu0 0
        %895 = vmatpush2.bf16.msra.mxu0 %v861
        %896 = vmatprep.subr.bf16.mxu0 0
        %897 = vmatpush2.bf16.msra.mxu0 %v860
        %898 = vmatprep.subr.bf16.mxu0 0
        %899 = vmatpush2.bf16.msra.mxu0 %v859
        %900 = vmatprep.subr.bf16.mxu0 0
        %901 = vmatpush2.bf16.msra.mxu0 %v858
        %902 = vmatprep.subr.bf16.mxu0 0
        %903 = vmatpush2.bf16.msra.mxu0 %v857
        %904 = vmatprep.subr.bf16.mxu0 0
        %905 = vmatpush2.bf16.msra.mxu0 %v856
        %906 = vmatprep.subr.bf16.mxu0 0
        %907 = vmatpush2.bf16.msra.mxu0 %v855
        %908 = vmatprep.subr.bf16.mxu0 0
        %909 = vmatpush2.bf16.msra.mxu0 %v854
        %910 = vmatprep.mubr.bf16.mxu0 %v728
        %911 = vmatmul.mubr.bf16.gmra.mxu0 %v727
        %v912 = vpop.f32.mrf.mxu0
        %v913 = vadd.f32 %v780, %v912
        %v914 = vpop.f32.mrf.mxu0
        %v915 = vpop.f32.mrf.mxu0
        %v916 = vadd.f32 %v780, %v915
        %v917 = vpop.f32.mrf.mxu0
        %918 = vmatprep.mubr.bf16.mxu0 %v730
        %919 = vmatmul.mubr.bf16.gmra.mxu0 %v729
        %v920 = vpop.f32.mrf.mxu0
        %v921 = vadd.f32 %v780, %v920
        %v922 = vpop.f32.mrf.mxu0
        %v923 = vpop.f32.mrf.mxu0
        %v924 = vadd.f32 %v780, %v923
        %v925 = vpop.f32.mrf.mxu0
        %926 = vmatprep.mubr.bf16.mxu0 %v732
        %927 = vmatmul.mubr.bf16.gmra.mxu0 %v731
        %v928 = vpop.f32.mrf.mxu0
        %v929 = vadd.f32 %v780, %v928
        %v930 = vpop.f32.mrf.mxu0
        %v931 = vpop.f32.mrf.mxu0
        %v932 = vadd.f32 %v780, %v931
        %v933 = vpop.f32.mrf.mxu0
        %934 = vmatprep.mubr.bf16.mxu0 %v734
        %935 = vmatmul.mubr.bf16.gmra.mxu0 %v733
        %v936 = vpop.f32.mrf.mxu0
        %v937 = vadd.f32 %v780, %v936
        %v938 = vpop.f32.mrf.mxu0
        %v939 = vpop.f32.mrf.mxu0
        %v940 = vadd.f32 %v780, %v939
        %v941 = vpop.f32.mrf.mxu0
        %942 = vmatprep.mubr.bf16.mxu0 %v736
        %943 = vmatmul.mubr.bf16.gmra.mxu0 %v735
        %v944 = vpop.f32.mrf.mxu0
        %v945 = vadd.f32 %v780, %v944
        %v946 = vpop.f32.mrf.mxu0
        %v947 = vpop.f32.mrf.mxu0
        %v948 = vadd.f32 %v780, %v947
        %v949 = vpop.f32.mrf.mxu0
        %950 = vmatprep.mubr.bf16.mxu0 %v738
        %951 = vmatmul.mubr.bf16.gmra.mxu0 %v737
        %v952 = vpop.f32.mrf.mxu0
        %v953 = vadd.f32 %v780, %v952
        %v954 = vpop.f32.mrf.mxu0
        %v955 = vpop.f32.mrf.mxu0
        %v956 = vadd.f32 %v780, %v955
        %v957 = vpop.f32.mrf.mxu0
        %958 = vmatprep.mubr.bf16.mxu0 %v740
        %959 = vmatmul.mubr.bf16.gmra.mxu0 %v739
        %v960 = vpop.f32.mrf.mxu0
        %v961 = vadd.f32 %v780, %v960
        %v962 = vpop.f32.mrf.mxu0
        %v963 = vpop.f32.mrf.mxu0
        %v964 = vadd.f32 %v780, %v963
        %v965 = vpop.f32.mrf.mxu0
        %966 = vmatprep.mubr.bf16.mxu0 %v742
        %967 = vmatmul.mubr.bf16.gmra.mxu0 %v741
        %v968 = vpop.f32.mrf.mxu0
        %v969 = vadd.f32 %v780, %v968
        %v970 = vpop.f32.mrf.mxu0
        %v971 = vpop.f32.mrf.mxu0
        %v972 = vadd.f32 %v780, %v971
        %v973 = vpop.f32.mrf.mxu0
        %974 = vdwg.mxu0
        %v975 = vmax.f32 %v913, 0.0
        %v976 = vmax.f32 %v916, 0.0
        %v977 = vmax.f32 %v921, 0.0
        %v978 = vmax.f32 %v924, 0.0
        %v979 = vmax.f32 %v929, 0.0
        %v980 = vmax.f32 %v932, 0.0
        %v981 = vmax.f32 %v937, 0.0
        %v982 = vmax.f32 %v940, 0.0
        %v983 = vmax.f32 %v945, 0.0
        %v984 = vmax.f32 %v948, 0.0
        %v985 = vmax.f32 %v953, 0.0
        %v986 = vmax.f32 %v956, 0.0
        %v987 = vmax.f32 %v961, 0.0
        %v988 = vmax.f32 %v964, 0.0
        %v989 = vmax.f32 %v969, 0.0
        %v990 = vmax.f32 %v972, 0.0
        %v991 = vpack.c.bf16 %v976, %v975
        %v992 = vpack.c.bf16 %v978, %v977
        %v993 = vpack.c.bf16 %v980, %v979
        %v994 = vpack.c.bf16 %v982, %v981
        %v995 = vpack.c.bf16 %v984, %v983
        %v996 = vpack.c.bf16 %v986, %v985
        %v997 = vpack.c.bf16 %v988, %v987
        %v998 = vpack.c.bf16 %v990, %v989
        %v999 = vld [vmem:[%s5] sm:$0xf]
        %v1000 = vld [vmem:[%s5 + $0x4] sm:$0xf]
        %v1001 = vld [vmem:[%s5 + $0x8] sm:$0xf]
        %v1002 = vld [vmem:[%s5 + $0xc] sm:$0xf]
        %v1003 = vld [vmem:[%s5 + $0x10] sm:$0xf]
        %v1004 = vld [vmem:[%s5 + $0x14] sm:$0xf]
        %v1005 = vld [vmem:[%s5 + $0x18] sm:$0xf]
        %v1006 = vld [vmem:[%s5 + $0x1c] sm:$0xf]
        %v1007 = vld [vmem:[%s5 + $0x20] sm:$0xf]
        %v1008 = vld [vmem:[%s5 + $0x24] sm:$0xf]
        %v1009 = vld [vmem:[%s5 + $0x28] sm:$0xf]
        %v1010 = vld [vmem:[%s5 + $0x2c] sm:$0xf]
        %v1011 = vld [vmem:[%s5 + $0x30] sm:$0xf]
        %v1012 = vld [vmem:[%s5 + $0x34] sm:$0xf]
        %v1013 = vld [vmem:[%s5 + $0x38] sm:$0xf]
        %v1014 = vld [vmem:[%s5 + $0x3c] sm:$0xf]
        %v1015 = vld [vmem:[%s6] sm:$0x1]
        %v1017 = vlaneseq
        %v1018 = vshrl.u32 %v1017, 7
        %v1019 = vsub.s32 0, %v1018
        %v1020 = vrot.slane %v1015, %v1019
        %v1038 = vunpack.c.l.b16 %v999
        %v1039 = vunpack.c.l.b16 %v1000
        %v1040 = vunpack.c.l.b16 %v1001
        %v1041 = vunpack.c.l.b16 %v1002
        %v1042 = vunpack.c.l.b16 %v1003
        %v1043 = vunpack.c.l.b16 %v1004
        %v1044 = vunpack.c.l.b16 %v1005
        %v1045 = vunpack.c.l.b16 %v1006
        %v1046 = vunpack.c.l.b16 %v1007
        %v1047 = vunpack.c.l.b16 %v1008
        %v1048 = vunpack.c.l.b16 %v1009
        %v1049 = vunpack.c.l.b16 %v1010
        %v1050 = vunpack.c.l.b16 %v1011
        %v1051 = vunpack.c.l.b16 %v1012
        %v1052 = vunpack.c.l.b16 %v1013
        %v1053 = vunpack.c.l.b16 %v1014
        %v1054 = vpack.c.b16 %v1039, %v1038
        %v1055 = vpack.c.b16 %v1041, %v1040
        %v1056 = vpack.c.b16 %v1043, %v1042
        %v1057 = vpack.c.b16 %v1045, %v1044
        %v1058 = vpack.c.b16 %v1047, %v1046
        %v1059 = vpack.c.b16 %v1049, %v1048
        %v1060 = vpack.c.b16 %v1051, %v1050
        %v1061 = vpack.c.b16 %v1053, %v1052
        %1070 = vmatprep.subr.bf16.mxu0 0
        %1071 = vmatpush1.bf16.msra.mxu0 %v1061
        %1072 = vmatprep.subr.bf16.mxu0 0
        %1073 = vmatpush1.bf16.msra.mxu0 %v1060
        %1074 = vmatprep.subr.bf16.mxu0 0
        %1075 = vmatpush1.bf16.msra.mxu0 %v1059
        %1076 = vmatprep.subr.bf16.mxu0 0
        %1077 = vmatpush1.bf16.msra.mxu0 %v1058
        %1078 = vmatprep.subr.bf16.mxu0 0
        %1079 = vmatpush1.bf16.msra.mxu0 %v1057
        %1080 = vmatprep.subr.bf16.mxu0 0
        %1081 = vmatpush1.bf16.msra.mxu0 %v1056
        %1082 = vmatprep.subr.bf16.mxu0 0
        %1083 = vmatpush1.bf16.msra.mxu0 %v1055
        %1084 = vmatprep.subr.bf16.mxu0 0
        %1085 = vmatpush1.bf16.msra.mxu0 %v1054
        %1086 = vmatprep.subr.bf16.mxu0 0
        %1087 = vmatpush2.bf16.msra.mxu0 0
        %1088 = vmatprep.subr.bf16.mxu0 0
        %1089 = vmatpush2.bf16.msra.mxu0 0
        %1090 = vmatprep.subr.bf16.mxu0 0
        %1091 = vmatpush2.bf16.msra.mxu0 0
        %1092 = vmatprep.subr.bf16.mxu0 0
        %1093 = vmatpush2.bf16.msra.mxu0 0
        %1094 = vmatprep.subr.bf16.mxu0 0
        %1095 = vmatpush2.bf16.msra.mxu0 0
        %1096 = vmatprep.subr.bf16.mxu0 0
        %1097 = vmatpush2.bf16.msra.mxu0 0
        %1098 = vmatprep.subr.bf16.mxu0 0
        %1099 = vmatpush2.bf16.msra.mxu0 0
        %1100 = vmatprep.subr.bf16.mxu0 0
        %1101 = vmatpush2.bf16.msra.mxu0 0
        %1102 = vmatprep.mubr.bf16.mxu0 0
        %1103 = vmatmul.mubr.bf16.gmra.mxu0 %v991
        %v1104 = vpop.f32.mrf.mxu0
        %v1105 = vadd.f32 %v1020, %v1104
        %v1106 = vpop.f32.mrf.mxu0
        %v1107 = vpop.f32.mrf.mxu0
        %v1108 = vadd.f32 %v1020, %v1107
        %v1109 = vpop.f32.mrf.mxu0
        %1110 = vmatprep.mubr.bf16.mxu0 0
        %1111 = vmatmul.mubr.bf16.gmra.mxu0 %v992
        %v1112 = vpop.f32.mrf.mxu0
        %v1113 = vadd.f32 %v1020, %v1112
        %v1114 = vpop.f32.mrf.mxu0
        %v1115 = vpop.f32.mrf.mxu0
        %v1116 = vadd.f32 %v1020, %v1115
        %v1117 = vpop.f32.mrf.mxu0
        %1118 = vmatprep.mubr.bf16.mxu0 0
        %1119 = vmatmul.mubr.bf16.gmra.mxu0 %v993
        %v1120 = vpop.f32.mrf.mxu0
        %v1121 = vadd.f32 %v1020, %v1120
        %v1122 = vpop.f32.mrf.mxu0
        %v1123 = vpop.f32.mrf.mxu0
        %v1124 = vadd.f32 %v1020, %v1123
        %v1125 = vpop.f32.mrf.mxu0
        %1126 = vmatprep.mubr.bf16.mxu0 0
        %1127 = vmatmul.mubr.bf16.gmra.mxu0 %v994
        %v1128 = vpop.f32.mrf.mxu0
        %v1129 = vadd.f32 %v1020, %v1128
        %v1130 = vpop.f32.mrf.mxu0
        %v1131 = vpop.f32.mrf.mxu0
        %v1132 = vadd.f32 %v1020, %v1131
        %v1133 = vpop.f32.mrf.mxu0
        %1134 = vmatprep.mubr.bf16.mxu0 0
        %1135 = vmatmul.mubr.bf16.gmra.mxu0 %v995
        %v1136 = vpop.f32.mrf.mxu0
        %v1137 = vadd.f32 %v1020, %v1136
        %v1138 = vpop.f32.mrf.mxu0
        %v1139 = vpop.f32.mrf.mxu0
        %v1140 = vadd.f32 %v1020, %v1139
        %v1141 = vpop.f32.mrf.mxu0
        %1142 = vmatprep.mubr.bf16.mxu0 0
        %1143 = vmatmul.mubr.bf16.gmra.mxu0 %v996
        %v1144 = vpop.f32.mrf.mxu0
        %v1145 = vadd.f32 %v1020, %v1144
        %v1146 = vpop.f32.mrf.mxu0
        %v1147 = vpop.f32.mrf.mxu0
        %v1148 = vadd.f32 %v1020, %v1147
        %v1149 = vpop.f32.mrf.mxu0
        %1150 = vmatprep.mubr.bf16.mxu0 0
        %1151 = vmatmul.mubr.bf16.gmra.mxu0 %v997
        %v1152 = vpop.f32.mrf.mxu0
        %v1153 = vadd.f32 %v1020, %v1152
        %v1154 = vpop.f32.mrf.mxu0
        %v1155 = vpop.f32.mrf.mxu0
        %v1156 = vadd.f32 %v1020, %v1155
        %v1157 = vpop.f32.mrf.mxu0
        %1158 = vmatprep.mubr.bf16.mxu0 0
        %1159 = vmatmul.mubr.bf16.gmra.mxu0 %v998
        %v1160 = vpop.f32.mrf.mxu0
        %v1161 = vadd.f32 %v1020, %v1160
        %v1162 = vpop.f32.mrf.mxu0
        %v1163 = vpop.f32.mrf.mxu0
        %v1164 = vadd.f32 %v1020, %v1163
        %v1165 = vpop.f32.mrf.mxu0
        %1166 = vdwg.mxu0
        %v1167 = vmax.f32 %v1105, 0.0
        %v1168 = vmax.f32 %v1108, 0.0
        %v1169 = vmax.f32 %v1113, 0.0
        %v1170 = vmax.f32 %v1116, 0.0
        %v1171 = vmax.f32 %v1121, 0.0
        %v1172 = vmax.f32 %v1124, 0.0
        %v1173 = vmax.f32 %v1129, 0.0
        %v1174 = vmax.f32 %v1132, 0.0
        %v1175 = vmax.f32 %v1137, 0.0
        %v1176 = vmax.f32 %v1140, 0.0
        %v1177 = vmax.f32 %v1145, 0.0
        %v1178 = vmax.f32 %v1148, 0.0
        %v1179 = vmax.f32 %v1153, 0.0
        %v1180 = vmax.f32 %v1156, 0.0
        %v1181 = vmax.f32 %v1161, 0.0
        %v1182 = vmax.f32 %v1164, 0.0
        %v1183 = vpack.c.bf16 %v1168, %v1167
        %v1184 = vpack.c.bf16 %v1170, %v1169
        %v1185 = vpack.c.bf16 %v1172, %v1171
        %v1186 = vpack.c.bf16 %v1174, %v1173
        %v1187 = vpack.c.bf16 %v1176, %v1175
        %v1188 = vpack.c.bf16 %v1178, %v1177
        %v1189 = vpack.c.bf16 %v1180, %v1179
        %v1190 = vpack.c.bf16 %v1182, %v1181
        %v1191 = vld [vmem:[%s7] sm:$0xf]
        %v1192 = vld [vmem:[%s7 + $0x4] sm:$0xf]
        %v1193 = vld [vmem:[%s7 + $0x8] sm:$0xf]
        %v1194 = vld [vmem:[%s7 + $0xc] sm:$0xf]
        %v1195 = vld [vmem:[%s7 + $0x10] sm:$0xf]
        %v1196 = vld [vmem:[%s7 + $0x14] sm:$0xf]
        %v1197 = vld [vmem:[%s7 + $0x18] sm:$0xf]
        %v1198 = vld [vmem:[%s7 + $0x1c] sm:$0xf]
        %v1199 = vld [vmem:[%s7 + $0x20] sm:$0xf]
        %v1200 = vld [vmem:[%s7 + $0x24] sm:$0xf]
        %v1201 = vld [vmem:[%s7 + $0x28] sm:$0xf]
        %v1202 = vld [vmem:[%s7 + $0x2c] sm:$0xf]
        %v1203 = vld [vmem:[%s7 + $0x30] sm:$0xf]
        %v1204 = vld [vmem:[%s7 + $0x34] sm:$0xf]
        %v1205 = vld [vmem:[%s7 + $0x38] sm:$0xf]
        %v1206 = vld [vmem:[%s7 + $0x3c] sm:$0xf]
        %v1207 = vld [vmem:[%s8] sm:$0x1]
        %v1209 = vlaneseq
        %v1210 = vshrl.u32 %v1209, 7
        %v1211 = vsub.s32 0, %v1210
        %v1212 = vrot.slane %v1207, %v1211
        %v1230 = vunpack.c.l.b16 %v1191
        %v1231 = vunpack.c.l.b16 %v1192
        %v1232 = vunpack.c.l.b16 %v1193
        %v1233 = vunpack.c.l.b16 %v1194
        %v1234 = vunpack.c.l.b16 %v1195
        %v1235 = vunpack.c.l.b16 %v1196
        %v1236 = vunpack.c.l.b16 %v1197
        %v1237 = vunpack.c.l.b16 %v1198
        %v1238 = vunpack.c.l.b16 %v1199
        %v1239 = vunpack.c.l.b16 %v1200
        %v1240 = vunpack.c.l.b16 %v1201
        %v1241 = vunpack.c.l.b16 %v1202
        %v1242 = vunpack.c.l.b16 %v1203
        %v1243 = vunpack.c.l.b16 %v1204
        %v1244 = vunpack.c.l.b16 %v1205
        %v1245 = vunpack.c.l.b16 %v1206
        %v1246 = vpack.c.b16 %v1231, %v1230
        %v1247 = vpack.c.b16 %v1233, %v1232
        %v1248 = vpack.c.b16 %v1235, %v1234
        %v1249 = vpack.c.b16 %v1237, %v1236
        %v1250 = vpack.c.b16 %v1239, %v1238
        %v1251 = vpack.c.b16 %v1241, %v1240
        %v1252 = vpack.c.b16 %v1243, %v1242
        %v1253 = vpack.c.b16 %v1245, %v1244
        %1262 = vmatprep.subr.bf16.mxu0 0
        %1263 = vmatpush1.bf16.msra.mxu0 %v1253
        %1264 = vmatprep.subr.bf16.mxu0 0
        %1265 = vmatpush1.bf16.msra.mxu0 %v1252
        %1266 = vmatprep.subr.bf16.mxu0 0
        %1267 = vmatpush1.bf16.msra.mxu0 %v1251
        %1268 = vmatprep.subr.bf16.mxu0 0
        %1269 = vmatpush1.bf16.msra.mxu0 %v1250
        %1270 = vmatprep.subr.bf16.mxu0 0
        %1271 = vmatpush1.bf16.msra.mxu0 %v1249
        %1272 = vmatprep.subr.bf16.mxu0 0
        %1273 = vmatpush1.bf16.msra.mxu0 %v1248
        %1274 = vmatprep.subr.bf16.mxu0 0
        %1275 = vmatpush1.bf16.msra.mxu0 %v1247
        %1276 = vmatprep.subr.bf16.mxu0 0
        %1277 = vmatpush1.bf16.msra.mxu0 %v1246
        %1278 = vmatprep.subr.bf16.mxu0 0
        %1279 = vmatpush2.bf16.msra.mxu0 0
        %1280 = vmatprep.subr.bf16.mxu0 0
        %1281 = vmatpush2.bf16.msra.mxu0 0
        %1282 = vmatprep.subr.bf16.mxu0 0
        %1283 = vmatpush2.bf16.msra.mxu0 0
        %1284 = vmatprep.subr.bf16.mxu0 0
        %1285 = vmatpush2.bf16.msra.mxu0 0
        %1286 = vmatprep.subr.bf16.mxu0 0
        %1287 = vmatpush2.bf16.msra.mxu0 0
        %1288 = vmatprep.subr.bf16.mxu0 0
        %1289 = vmatpush2.bf16.msra.mxu0 0
        %1290 = vmatprep.subr.bf16.mxu0 0
        %1291 = vmatpush2.bf16.msra.mxu0 0
        %1292 = vmatprep.subr.bf16.mxu0 0
        %1293 = vmatpush2.bf16.msra.mxu0 0
        %1294 = vmatprep.mubr.bf16.mxu0 0
        %1295 = vmatmul.mubr.bf16.gmra.mxu0 %v1183
        %v1296 = vpop.f32.mrf.mxu0
        %v1297 = vadd.f32 %v1212, %v1296
        %v1298 = vpop.f32.mrf.mxu0
        %v1299 = vpop.f32.mrf.mxu0
        %v1300 = vadd.f32 %v1212, %v1299
        %v1301 = vpop.f32.mrf.mxu0
        %1302 = vmatprep.mubr.bf16.mxu0 0
        %1303 = vmatmul.mubr.bf16.gmra.mxu0 %v1184
        %v1304 = vpop.f32.mrf.mxu0
        %v1305 = vadd.f32 %v1212, %v1304
        %v1306 = vpop.f32.mrf.mxu0
        %v1307 = vpop.f32.mrf.mxu0
        %v1308 = vadd.f32 %v1212, %v1307
        %v1309 = vpop.f32.mrf.mxu0
        %1310 = vmatprep.mubr.bf16.mxu0 0
        %1311 = vmatmul.mubr.bf16.gmra.mxu0 %v1185
        %v1312 = vpop.f32.mrf.mxu0
        %v1313 = vadd.f32 %v1212, %v1312
        %v1314 = vpop.f32.mrf.mxu0
        %v1315 = vpop.f32.mrf.mxu0
        %v1316 = vadd.f32 %v1212, %v1315
        %v1317 = vpop.f32.mrf.mxu0
        %1318 = vmatprep.mubr.bf16.mxu0 0
        %1319 = vmatmul.mubr.bf16.gmra.mxu0 %v1186
        %v1320 = vpop.f32.mrf.mxu0
        %v1321 = vadd.f32 %v1212, %v1320
        %v1322 = vpop.f32.mrf.mxu0
        %v1323 = vpop.f32.mrf.mxu0
        %v1324 = vadd.f32 %v1212, %v1323
        %v1325 = vpop.f32.mrf.mxu0
        %1326 = vmatprep.mubr.bf16.mxu0 0
        %1327 = vmatmul.mubr.bf16.gmra.mxu0 %v1187
        %v1328 = vpop.f32.mrf.mxu0
        %v1329 = vadd.f32 %v1212, %v1328
        %v1330 = vpop.f32.mrf.mxu0
        %v1331 = vpop.f32.mrf.mxu0
        %v1332 = vadd.f32 %v1212, %v1331
        %v1333 = vpop.f32.mrf.mxu0
        %1334 = vmatprep.mubr.bf16.mxu0 0
        %1335 = vmatmul.mubr.bf16.gmra.mxu0 %v1188
        %v1336 = vpop.f32.mrf.mxu0
        %v1337 = vadd.f32 %v1212, %v1336
        %v1338 = vpop.f32.mrf.mxu0
        %v1339 = vpop.f32.mrf.mxu0
        %v1340 = vadd.f32 %v1212, %v1339
        %v1341 = vpop.f32.mrf.mxu0
        %1342 = vmatprep.mubr.bf16.mxu0 0
        %1343 = vmatmul.mubr.bf16.gmra.mxu0 %v1189
        %v1344 = vpop.f32.mrf.mxu0
        %v1345 = vadd.f32 %v1212, %v1344
        %v1346 = vpop.f32.mrf.mxu0
        %v1347 = vpop.f32.mrf.mxu0
        %v1348 = vadd.f32 %v1212, %v1347
        %v1349 = vpop.f32.mrf.mxu0
        %1350 = vmatprep.mubr.bf16.mxu0 0
        %1351 = vmatmul.mubr.bf16.gmra.mxu0 %v1190
        %v1352 = vpop.f32.mrf.mxu0
        %v1353 = vadd.f32 %v1212, %v1352
        %v1354 = vpop.f32.mrf.mxu0
        %v1355 = vpop.f32.mrf.mxu0
        %v1356 = vadd.f32 %v1212, %v1355
        %v1357 = vpop.f32.mrf.mxu0
        %1358 = vdwg.mxu0
        %v1359 = vmax.f32 %v1297, 0.0
        %v1360 = vmax.f32 %v1300, 0.0
        %v1361 = vmax.f32 %v1305, 0.0
        %v1362 = vmax.f32 %v1308, 0.0
        %v1363 = vmax.f32 %v1313, 0.0
        %v1364 = vmax.f32 %v1316, 0.0
        %v1365 = vmax.f32 %v1321, 0.0
        %v1366 = vmax.f32 %v1324, 0.0
        %v1367 = vmax.f32 %v1329, 0.0
        %v1368 = vmax.f32 %v1332, 0.0
        %v1369 = vmax.f32 %v1337, 0.0
        %v1370 = vmax.f32 %v1340, 0.0
        %v1371 = vmax.f32 %v1345, 0.0
        %v1372 = vmax.f32 %v1348, 0.0
        %v1373 = vmax.f32 %v1353, 0.0
        %v1374 = vmax.f32 %v1356, 0.0
        %v1375 = vpack.c.bf16 %v1360, %v1359
        %v1376 = vpack.c.bf16 %v1362, %v1361
        %v1377 = vpack.c.bf16 %v1364, %v1363
        %v1378 = vpack.c.bf16 %v1366, %v1365
        %v1379 = vpack.c.bf16 %v1368, %v1367
        %v1380 = vpack.c.bf16 %v1370, %v1369
        %v1381 = vpack.c.bf16 %v1372, %v1371
        %v1382 = vpack.c.bf16 %v1374, %v1373
        %v1383 = vld [vmem:[%s9] sm:$0xf]
        %v1384 = vld [vmem:[%s9 + $0x4] sm:$0xf]
        %v1385 = vld [vmem:[%s9 + $0x8] sm:$0xf]
        %v1386 = vld [vmem:[%s9 + $0xc] sm:$0xf]
        %v1387 = vld [vmem:[%s9 + $0x10] sm:$0xf]
        %v1388 = vld [vmem:[%s9 + $0x14] sm:$0xf]
        %v1389 = vld [vmem:[%s9 + $0x18] sm:$0xf]
        %v1390 = vld [vmem:[%s9 + $0x1c] sm:$0xf]
        %v1391 = vld [vmem:[%s9 + $0x20] sm:$0xf]
        %v1392 = vld [vmem:[%s9 + $0x24] sm:$0xf]
        %v1393 = vld [vmem:[%s9 + $0x28] sm:$0xf]
        %v1394 = vld [vmem:[%s9 + $0x2c] sm:$0xf]
        %v1395 = vld [vmem:[%s9 + $0x30] sm:$0xf]
        %v1396 = vld [vmem:[%s9 + $0x34] sm:$0xf]
        %v1397 = vld [vmem:[%s9 + $0x38] sm:$0xf]
        %v1398 = vld [vmem:[%s9 + $0x3c] sm:$0xf]
        %v1399 = vld [vmem:[%s10] sm:$0x1]
        %v1401 = vlaneseq
        %v1402 = vshrl.u32 %v1401, 7
        %v1403 = vsub.s32 0, %v1402
        %v1404 = vrot.slane %v1399, %v1403
        %v1422 = vunpack.c.l.b16 %v1383
        %v1423 = vunpack.c.l.b16 %v1384
        %v1424 = vunpack.c.l.b16 %v1385
        %v1425 = vunpack.c.l.b16 %v1386
        %v1426 = vunpack.c.l.b16 %v1387
        %v1427 = vunpack.c.l.b16 %v1388
        %v1428 = vunpack.c.l.b16 %v1389
        %v1429 = vunpack.c.l.b16 %v1390
        %v1430 = vunpack.c.l.b16 %v1391
        %v1431 = vunpack.c.l.b16 %v1392
        %v1432 = vunpack.c.l.b16 %v1393
        %v1433 = vunpack.c.l.b16 %v1394
        %v1434 = vunpack.c.l.b16 %v1395
        %v1435 = vunpack.c.l.b16 %v1396
        %v1436 = vunpack.c.l.b16 %v1397
        %v1437 = vunpack.c.l.b16 %v1398
        %v1438 = vpack.c.b16 %v1423, %v1422
        %v1439 = vpack.c.b16 %v1425, %v1424
        %v1440 = vpack.c.b16 %v1427, %v1426
        %v1441 = vpack.c.b16 %v1429, %v1428
        %v1442 = vpack.c.b16 %v1431, %v1430
        %v1443 = vpack.c.b16 %v1433, %v1432
        %v1444 = vpack.c.b16 %v1435, %v1434
        %v1445 = vpack.c.b16 %v1437, %v1436
        %1454 = vmatprep.subr.bf16.mxu0 0
        %1455 = vmatpush1.bf16.msra.mxu0 %v1445
        %1456 = vmatprep.subr.bf16.mxu0 0
        %1457 = vmatpush1.bf16.msra.mxu0 %v1444
        %1458 = vmatprep.subr.bf16.mxu0 0
        %1459 = vmatpush1.bf16.msra.mxu0 %v1443
        %1460 = vmatprep.subr.bf16.mxu0 0
        %1461 = vmatpush1.bf16.msra.mxu0 %v1442
        %1462 = vmatprep.subr.bf16.mxu0 0
        %1463 = vmatpush1.bf16.msra.mxu0 %v1441
        %1464 = vmatprep.subr.bf16.mxu0 0
        %1465 = vmatpush1.bf16.msra.mxu0 %v1440
        %1466 = vmatprep.subr.bf16.mxu0 0
        %1467 = vmatpush1.bf16.msra.mxu0 %v1439
        %1468 = vmatprep.subr.bf16.mxu0 0
        %1469 = vmatpush1.bf16.msra.mxu0 %v1438
        %1470 = vmatprep.subr.bf16.mxu0 0
        %1471 = vmatpush2.bf16.msra.mxu0 0
        %1472 = vmatprep.subr.bf16.mxu0 0
        %1473 = vmatpush2.bf16.msra.mxu0 0
        %1474 = vmatprep.subr.bf16.mxu0 0
        %1475 = vmatpush2.bf16.msra.mxu0 0
        %1476 = vmatprep.subr.bf16.mxu0 0
        %1477 = vmatpush2.bf16.msra.mxu0 0
        %1478 = vmatprep.subr.bf16.mxu0 0
        %1479 = vmatpush2.bf16.msra.mxu0 0
        %1480 = vmatprep.subr.bf16.mxu0 0
        %1481 = vmatpush2.bf16.msra.mxu0 0
        %1482 = vmatprep.subr.bf16.mxu0 0
        %1483 = vmatpush2.bf16.msra.mxu0 0
        %1484 = vmatprep.subr.bf16.mxu0 0
        %1485 = vmatpush2.bf16.msra.mxu0 0
        %1486 = vmatprep.mubr.bf16.mxu0 0
        %1487 = vmatmul.mubr.bf16.gmra.mxu0 %v1375
        %v1488 = vpop.f32.mrf.mxu0
        %v1489 = vadd.f32 %v1404, %v1488
        %v1490 = vpop.f32.mrf.mxu0
        %v1491 = vpop.f32.mrf.mxu0
        %v1492 = vadd.f32 %v1404, %v1491
        %v1493 = vpop.f32.mrf.mxu0
        %1494 = vmatprep.mubr.bf16.mxu0 0
        %1495 = vmatmul.mubr.bf16.gmra.mxu0 %v1376
        %v1496 = vpop.f32.mrf.mxu0
        %v1497 = vadd.f32 %v1404, %v1496
        %v1498 = vpop.f32.mrf.mxu0
        %v1499 = vpop.f32.mrf.mxu0
        %v1500 = vadd.f32 %v1404, %v1499
        %v1501 = vpop.f32.mrf.mxu0
        %1502 = vmatprep.mubr.bf16.mxu0 0
        %1503 = vmatmul.mubr.bf16.gmra.mxu0 %v1377
        %v1504 = vpop.f32.mrf.mxu0
        %v1505 = vadd.f32 %v1404, %v1504
        %v1506 = vpop.f32.mrf.mxu0
        %v1507 = vpop.f32.mrf.mxu0
        %v1508 = vadd.f32 %v1404, %v1507
        %v1509 = vpop.f32.mrf.mxu0
        %1510 = vmatprep.mubr.bf16.mxu0 0
        %1511 = vmatmul.mubr.bf16.gmra.mxu0 %v1378
        %v1512 = vpop.f32.mrf.mxu0
        %v1513 = vadd.f32 %v1404, %v1512
        %v1514 = vpop.f32.mrf.mxu0
        %v1515 = vpop.f32.mrf.mxu0
        %v1516 = vadd.f32 %v1404, %v1515
        %v1517 = vpop.f32.mrf.mxu0
        %1518 = vmatprep.mubr.bf16.mxu0 0
        %1519 = vmatmul.mubr.bf16.gmra.mxu0 %v1379
        %v1520 = vpop.f32.mrf.mxu0
        %v1521 = vadd.f32 %v1404, %v1520
        %v1522 = vpop.f32.mrf.mxu0
        %v1523 = vpop.f32.mrf.mxu0
        %v1524 = vadd.f32 %v1404, %v1523
        %v1525 = vpop.f32.mrf.mxu0
        %1526 = vmatprep.mubr.bf16.mxu0 0
        %1527 = vmatmul.mubr.bf16.gmra.mxu0 %v1380
        %v1528 = vpop.f32.mrf.mxu0
        %v1529 = vadd.f32 %v1404, %v1528
        %v1530 = vpop.f32.mrf.mxu0
        %v1531 = vpop.f32.mrf.mxu0
        %v1532 = vadd.f32 %v1404, %v1531
        %v1533 = vpop.f32.mrf.mxu0
        %1534 = vmatprep.mubr.bf16.mxu0 0
        %1535 = vmatmul.mubr.bf16.gmra.mxu0 %v1381
        %v1536 = vpop.f32.mrf.mxu0
        %v1537 = vadd.f32 %v1404, %v1536
        %v1538 = vpop.f32.mrf.mxu0
        %v1539 = vpop.f32.mrf.mxu0
        %v1540 = vadd.f32 %v1404, %v1539
        %v1541 = vpop.f32.mrf.mxu0
        %1542 = vmatprep.mubr.bf16.mxu0 0
        %1543 = vmatmul.mubr.bf16.gmra.mxu0 %v1382
        %v1544 = vpop.f32.mrf.mxu0
        %v1545 = vadd.f32 %v1404, %v1544
        %v1546 = vpop.f32.mrf.mxu0
        %v1547 = vpop.f32.mrf.mxu0
        %v1548 = vadd.f32 %v1404, %v1547
        %v1549 = vpop.f32.mrf.mxu0
        %1550 = vdwg.mxu0
        %v1551 = vmax.f32 %v1489, 0.0
        %v1552 = vmax.f32 %v1492, 0.0
        %v1553 = vmax.f32 %v1497, 0.0
        %v1554 = vmax.f32 %v1500, 0.0
        %v1555 = vmax.f32 %v1505, 0.0
        %v1556 = vmax.f32 %v1508, 0.0
        %v1557 = vmax.f32 %v1513, 0.0
        %v1558 = vmax.f32 %v1516, 0.0
        %v1559 = vmax.f32 %v1521, 0.0
        %v1560 = vmax.f32 %v1524, 0.0
        %v1561 = vmax.f32 %v1529, 0.0
        %v1562 = vmax.f32 %v1532, 0.0
        %v1563 = vmax.f32 %v1537, 0.0
        %v1564 = vmax.f32 %v1540, 0.0
        %v1565 = vmax.f32 %v1545, 0.0
        %v1566 = vmax.f32 %v1548, 0.0
        %v1567 = vpack.c.bf16 %v1552, %v1551
        %v1568 = vpack.c.bf16 %v1554, %v1553
        %v1569 = vpack.c.bf16 %v1556, %v1555
        %v1570 = vpack.c.bf16 %v1558, %v1557
        %v1571 = vpack.c.bf16 %v1560, %v1559
        %v1572 = vpack.c.bf16 %v1562, %v1561
        %v1573 = vpack.c.bf16 %v1564, %v1563
        %v1574 = vpack.c.bf16 %v1566, %v1565
        %v1575 = vld [vmem:[#allocation4] sm:$0xf]
        %v1576 = vld [vmem:[#allocation4 + $0x4] sm:$0xf]
        %v1577 = vld [vmem:[#allocation4 + $0x8] sm:$0xf]
        %v1578 = vld [vmem:[#allocation4 + $0xc] sm:$0xf]
        %v1579 = vld [vmem:[#allocation4 + $0x10] sm:$0xf]
        %v1580 = vld [vmem:[#allocation4 + $0x14] sm:$0xf]
        %v1581 = vld [vmem:[#allocation4 + $0x18] sm:$0xf]
        %v1582 = vld [vmem:[#allocation4 + $0x1c] sm:$0xf]
        %v1583 = vld [vmem:[#allocation4 + $0x20] sm:$0xf]
        %v1584 = vld [vmem:[#allocation4 + $0x24] sm:$0xf]
        %v1585 = vld [vmem:[#allocation4 + $0x28] sm:$0xf]
        %v1586 = vld [vmem:[#allocation4 + $0x2c] sm:$0xf]
        %v1587 = vld [vmem:[#allocation4 + $0x30] sm:$0xf]
        %v1588 = vld [vmem:[#allocation4 + $0x34] sm:$0xf]
        %v1589 = vld [vmem:[#allocation4 + $0x38] sm:$0xf]
        %v1590 = vld [vmem:[#allocation4 + $0x3c] sm:$0xf]
        %v1591 = vld [vmem:[%s12] sm:$0x1]
        %v1593 = vlaneseq
        %v1594 = vshrl.u32 %v1593, 7
        %v1595 = vsub.s32 0, %v1594
        %v1596 = vrot.slane %v1591, %v1595
        %v1614 = vunpack.c.l.b16 %v1575
        %v1615 = vunpack.c.l.b16 %v1576
        %v1616 = vunpack.c.l.b16 %v1577
        %v1617 = vunpack.c.l.b16 %v1578
        %v1618 = vunpack.c.l.b16 %v1579
        %v1619 = vunpack.c.l.b16 %v1580
        %v1620 = vunpack.c.l.b16 %v1581
        %v1621 = vunpack.c.l.b16 %v1582
        %v1622 = vunpack.c.l.b16 %v1583
        %v1623 = vunpack.c.l.b16 %v1584
        %v1624 = vunpack.c.l.b16 %v1585
        %v1625 = vunpack.c.l.b16 %v1586
        %v1626 = vunpack.c.l.b16 %v1587
        %v1627 = vunpack.c.l.b16 %v1588
        %v1628 = vunpack.c.l.b16 %v1589
        %v1629 = vunpack.c.l.b16 %v1590
        %v1630 = vpack.c.b16 %v1615, %v1614
        %v1631 = vpack.c.b16 %v1617, %v1616
        %v1632 = vpack.c.b16 %v1619, %v1618
        %v1633 = vpack.c.b16 %v1621, %v1620
        %v1634 = vpack.c.b16 %v1623, %v1622
        %v1635 = vpack.c.b16 %v1625, %v1624
        %v1636 = vpack.c.b16 %v1627, %v1626
        %v1637 = vpack.c.b16 %v1629, %v1628
        %1646 = vmatprep.subr.bf16.mxu0 0
        %1647 = vmatpush1.bf16.msra.mxu0 %v1637
        %1648 = vmatprep.subr.bf16.mxu0 0
        %1649 = vmatpush1.bf16.msra.mxu0 %v1636
        %1650 = vmatprep.subr.bf16.mxu0 0
        %1651 = vmatpush1.bf16.msra.mxu0 %v1635
        %1652 = vmatprep.subr.bf16.mxu0 0
        %1653 = vmatpush1.bf16.msra.mxu0 %v1634
        %1654 = vmatprep.subr.bf16.mxu0 0
        %1655 = vmatpush1.bf16.msra.mxu0 %v1633
        %1656 = vmatprep.subr.bf16.mxu0 0
        %1657 = vmatpush1.bf16.msra.mxu0 %v1632
        %1658 = vmatprep.subr.bf16.mxu0 0
        %1659 = vmatpush1.bf16.msra.mxu0 %v1631
        %1660 = vmatprep.subr.bf16.mxu0 0
        %1661 = vmatpush1.bf16.msra.mxu0 %v1630
        %1662 = vmatprep.subr.bf16.mxu0 0
        %1663 = vmatpush2.bf16.msra.mxu0 0
        %1664 = vmatprep.subr.bf16.mxu0 0
        %1665 = vmatpush2.bf16.msra.mxu0 0
        %1666 = vmatprep.subr.bf16.mxu0 0
        %1667 = vmatpush2.bf16.msra.mxu0 0
        %1668 = vmatprep.subr.bf16.mxu0 0
        %1669 = vmatpush2.bf16.msra.mxu0 0
        %1670 = vmatprep.subr.bf16.mxu0 0
        %1671 = vmatpush2.bf16.msra.mxu0 0
        %1672 = vmatprep.subr.bf16.mxu0 0
        %1673 = vmatpush2.bf16.msra.mxu0 0
        %1674 = vmatprep.subr.bf16.mxu0 0
        %1675 = vmatpush2.bf16.msra.mxu0 0
        %1676 = vmatprep.subr.bf16.mxu0 0
        %1677 = vmatpush2.bf16.msra.mxu0 0
        %1678 = vmatprep.mubr.bf16.mxu0 0
        %1679 = vmatmul.mubr.bf16.gmra.mxu0 %v1567
        %v1680 = vpop.f32.mrf.mxu0
        %v1681 = vadd.f32 %v1596, %v1680
        %v1682 = vpop.f32.mrf.mxu0
        %v1683 = vpop.f32.mrf.mxu0
        %v1684 = vadd.f32 %v1596, %v1683
        %v1685 = vpop.f32.mrf.mxu0
        %1686 = vmatprep.mubr.bf16.mxu0 0
        %1687 = vmatmul.mubr.bf16.gmra.mxu0 %v1568
        %v1688 = vpop.f32.mrf.mxu0
        %v1689 = vadd.f32 %v1596, %v1688
        %v1690 = vpop.f32.mrf.mxu0
        %v1691 = vpop.f32.mrf.mxu0
        %v1692 = vadd.f32 %v1596, %v1691
        %v1693 = vpop.f32.mrf.mxu0
        %1694 = vmatprep.mubr.bf16.mxu0 0
        %1695 = vmatmul.mubr.bf16.gmra.mxu0 %v1569
        %v1696 = vpop.f32.mrf.mxu0
        %v1697 = vadd.f32 %v1596, %v1696
        %v1698 = vpop.f32.mrf.mxu0
        %v1699 = vpop.f32.mrf.mxu0
        %v1700 = vadd.f32 %v1596, %v1699
        %v1701 = vpop.f32.mrf.mxu0
        %1702 = vmatprep.mubr.bf16.mxu0 0
        %1703 = vmatmul.mubr.bf16.gmra.mxu0 %v1570
        %v1704 = vpop.f32.mrf.mxu0
        %v1705 = vadd.f32 %v1596, %v1704
        %v1706 = vpop.f32.mrf.mxu0
        %v1707 = vpop.f32.mrf.mxu0
        %v1708 = vadd.f32 %v1596, %v1707
        %v1709 = vpop.f32.mrf.mxu0
        %1710 = vmatprep.mubr.bf16.mxu0 0
        %1711 = vmatmul.mubr.bf16.gmra.mxu0 %v1571
        %v1712 = vpop.f32.mrf.mxu0
        %v1713 = vadd.f32 %v1596, %v1712
        %v1714 = vpop.f32.mrf.mxu0
        %v1715 = vpop.f32.mrf.mxu0
        %v1716 = vadd.f32 %v1596, %v1715
        %v1717 = vpop.f32.mrf.mxu0
        %1718 = vmatprep.mubr.bf16.mxu0 0
        %1719 = vmatmul.mubr.bf16.gmra.mxu0 %v1572
        %v1720 = vpop.f32.mrf.mxu0
        %v1721 = vadd.f32 %v1596, %v1720
        %v1722 = vpop.f32.mrf.mxu0
        %v1723 = vpop.f32.mrf.mxu0
        %v1724 = vadd.f32 %v1596, %v1723
        %v1725 = vpop.f32.mrf.mxu0
        %1726 = vmatprep.mubr.bf16.mxu0 0
        %1727 = vmatmul.mubr.bf16.gmra.mxu0 %v1573
        %v1728 = vpop.f32.mrf.mxu0
        %v1729 = vadd.f32 %v1596, %v1728
        %v1730 = vpop.f32.mrf.mxu0
        %v1731 = vpop.f32.mrf.mxu0
        %v1732 = vadd.f32 %v1596, %v1731
        %v1733 = vpop.f32.mrf.mxu0
        %1734 = vmatprep.mubr.bf16.mxu0 0
        %1735 = vmatmul.mubr.bf16.gmra.mxu0 %v1574
        %v1736 = vpop.f32.mrf.mxu0
        %v1737 = vadd.f32 %v1596, %v1736
        %v1738 = vpop.f32.mrf.mxu0
        %v1739 = vpop.f32.mrf.mxu0
        %v1740 = vadd.f32 %v1596, %v1739
        %v1741 = vpop.f32.mrf.mxu0
        %1742 = vdwg.mxu0
        %vm1743 = vcmask 15360
        %1744 = vst.msk [vmem:[%s470] sm:$0xff] %vm1743, %v1681
        %1745 = vst.msk [vmem:[%s470 + $0x8] sm:$0xff] %vm1743, %v1684
        %1746 = vst.msk [vmem:[%s470 + $0x10] sm:$0xff] %vm1743, %v1689
        %1747 = vst.msk [vmem:[%s470 + $0x18] sm:$0xff] %vm1743, %v1692
        %1748 = vst.msk [vmem:[%s470 + $0x20] sm:$0xff] %vm1743, %v1697
        %1749 = vst.msk [vmem:[%s470 + $0x28] sm:$0xff] %vm1743, %v1700
        %1750 = vst.msk [vmem:[%s470 + $0x30] sm:$0xff] %vm1743, %v1705
        %1751 = vst.msk [vmem:[%s470 + $0x38] sm:$0xff] %vm1743, %v1708
        %1752 = vst.msk [vmem:[%s470 + $0x40] sm:$0xff] %vm1743, %v1713
        %1753 = vst.msk [vmem:[%s470 + $0x48] sm:$0xff] %vm1743, %v1716
        %1754 = vst.msk [vmem:[%s470 + $0x50] sm:$0xff] %vm1743, %v1721
        %1755 = vst.msk [vmem:[%s470 + $0x58] sm:$0xff] %vm1743, %v1724
        %1756 = vst.msk [vmem:[%s470 + $0x60] sm:$0xff] %vm1743, %v1729
        %1757 = vst.msk [vmem:[%s470 + $0x68] sm:$0xff] %vm1743, %v1732
        %1758 = vst.msk [vmem:[%s470 + $0x70] sm:$0xff] %vm1743, %v1737
        %1759 = vst.msk [vmem:[%s470 + $0x78] sm:$0xff] %vm1743, %v1740
        %s1760 = smul.u32 16, %s26
        %p1761 = scmp.lt.s32.totalorder %s1760, 31
        %s1762 = scalar_select %p1761, %s1760, 31
        %s1763 = smul.addr %s1762, 8
        %s1764 = scalar_lea.vmem %s13, %s1763
        // Predicated region
        $region81: #{tpu_custom_call.1} parent=71 // pred_check
          %p1765 = pneg %p322
        $region82: #{tpu_custom_call.1} parent=71 // pred_check_branch
          %1767 = sbr.rel (%p1765) target = $region84
        $region83: #{tpu_custom_call.1} parent=71 // pred_region
          %s1768 = smul.u32 16, %s26
        $region84: #{tpu_custom_call.1} parent=71 // pred_fallthru
          _
      $region72: #{tpu_custom_call.1} parent=5 // pred_fallthru
        _
      %p1769 = scmp.le.s32.totalorder 2, %s21
      // Predicated region
      $region85: #{tpu_custom_call.1} parent=5 // pred_check
        %p1770 = pneg %p1769
      $region86: #{tpu_custom_call.1} parent=5 // pred_check_branch
        %1772 = sbr.rel (%p1770) target = $region88
      $region87: #{tpu_custom_call.1} parent=5 // pred_region
        %s1773 = ssub.s32 %s21, 2
        // Predicated region
        $region89: #{tpu_custom_call.1} parent=87 // pred_check
          %p1774 = pneg %p328
        $region90: #{tpu_custom_call.1} parent=87 // pred_check_branch
          %1776 = sbr.rel (%p1774) target = $region92
        $region91: #{tpu_custom_call.1} parent=87 // pred_region
          %s1777 = smul.u32 16, %s27
          %p1778 = scmp.lt.s32.totalorder %s1777, 31
          %s1779 = scalar_select %p1778, %s1777, 31
          %s1780 = smul.addr %s1779, 8
          %s1781 = scalar_lea.vmem %s13, %s1780
        $region92: #{tpu_custom_call.1} parent=87 // pred_fallthru
          _
      $region88: #{tpu_custom_call.1} parent=5 // pred_fallthru
        _
    $region6: #{tpu_custom_call.1} parent=1 // loop_footer
      %s25 = sadd.s32 1, %s21
    $region7: #{tpu_custom_call.1} parent=1 // loop_footer_branch
      %20 = sbr.rel target = $region3
    $region8: #{tpu_custom_call.1} parent=1 // loop_exit
      _
    %1782 = vsyncpa [#allocation3], 1
    %s1783 = scalar_lea.sflag [#allocation3], 1
    %1784 = vsyncpa %s1783, 1
    %1785 = vsyncpa [#allocation5], 1

</llo_original>
